<compile_context>
chip_gen: v6e
topology: v6e:2x2x1
jax: 0.10.0
libtpu: 0.0.40
codegen_flags: <defaults>
</compile_context>

<pallas_src>
import functools

import jax
import jax.numpy as jnp
from jax.experimental import pallas as pl
from jax.experimental.pallas import tpu as pltpu

LANE = 128
_BN_EPS = 1e-5


def _round_up(n, m):
    return ((n + m - 1) // m) * m


def gnn_kernel(x_ref, adj_ref, w1_ref, w2_ref, w3_ref, wl_ref, vecs_ref,
               out_ref, *, valid_rows):
    """Single-shot GNN forward.

    x_ref   : (BNK, cin_p) f32   flattened+padded node features
    adj_ref : (BNK, BNK)   f32   block-diagonal, zero-padded adjacency
    w*_ref  : (2, K, O)    bf16  stacked [lin_rel, lin_root] weights
    wl_ref  : (2*h_p+o_p, o_p) bf16 final Linear weight
    vecs_ref: (10, cmax)   f32   rows: b1,g1,be1,b2,g2,be2,b3,g3,be3,bl
    out_ref : (BNK, o_p)   f32
    """
    BNK = x_ref.shape[0]
    h_p = w1_ref.shape[2]
    o_p = w3_ref.shape[2]
    inv_n = 1.0 / float(valid_rows)

    # Row-validity mask: padded rows must not pollute BatchNorm statistics.
    row_ok = jax.lax.broadcasted_iota(jnp.int32, (BNK, 1), 0) < valid_rows

    # ---- normalize adjacency once (exact f32 divide), reuse for 3 layers ----
    adj = adj_ref[...]                                     # (BNK, BNK) f32
    deg = jnp.sum(adj, axis=-1, keepdims=True)             # (BNK, 1)
    adj_n = (adj / jnp.maximum(deg, 1.0)).astype(jnp.bfloat16)

    def vec(r, width):
        return vecs_ref[r:r + 1, :width]                   # (1, width) f32

    def sage_relu_bn(x_bf, w_ref, b, g, be, c_out):
        """DenseSAGEConv(normalize=False) + ReLU + training-mode BatchNorm1d."""
        # Neighbor mean aggregation: one full-width MXU matmul, f32 accumulate.
        agg = jnp.dot(adj_n, x_bf, preferred_element_type=jnp.float32)
        h = (jnp.dot(agg.astype(jnp.bfloat16), w_ref[0],
                     preferred_element_type=jnp.float32)
             + jnp.dot(x_bf, w_ref[1], preferred_element_type=jnp.float32)
             + b)                                          # fused (b_rel+b_root)
        # ReLU, and zero the padded rows so BN stats see only real rows.
        h = jnp.where(row_ok, jnp.maximum(h, 0.0), 0.0)
        # One reduction pass for both E[x] and E[x^2].
        stats = jnp.sum(jnp.concatenate([h, h * h], axis=-1),
                        axis=0, keepdims=True) * inv_n      # (1, 2*c_out)
        mean = stats[:, :c_out]
        var = jnp.maximum(stats[:, c_out:] - mean * mean, 0.0)
        inv_std = jax.lax.rsqrt(var + _BN_EPS)              # EUP
        return (h - mean) * (inv_std * g) + be

    x0_bf = x_ref[...].astype(jnp.bfloat16)

    # Layer 1 + its partial contribution to the final Linear.
    x1 = sage_relu_bn(x0_bf, w1_ref, vec(0, h_p), vec(1, h_p), vec(2, h_p), h_p)
    x1_bf = x1.astype(jnp.bfloat16)
    lin = jnp.dot(x1_bf, wl_ref[0:h_p, :], preferred_element_type=jnp.float32)

    # Layer 2.
    x2 = sage_relu_bn(x1_bf, w2_ref, vec(3, h_p), vec(4, h_p), vec(5, h_p), h_p)
    x2_bf = x2.astype(jnp.bfloat16)
    lin = lin + jnp.dot(x2_bf, wl_ref[h_p:2 * h_p, :],
                        preferred_element_type=jnp.float32)

    # Layer 3.
    x3 = sage_relu_bn(x2_bf, w3_ref, vec(6, o_p), vec(7, o_p), vec(8, o_p), o_p)
    lin = lin + jnp.dot(x3.astype(jnp.bfloat16), wl_ref[2 * h_p:, :],
                        preferred_element_type=jnp.float32)

    # Final Linear bias + ReLU; lane-dense (BNK, o_p) store.
    out_ref[...] = jnp.maximum(lin + vec(9, o_p), 0.0)


def init_params(key, in_channels, hidden_channels, out_channels):
    """Deterministic synthetic params (PyTorch-Linear-like fan-in uniform)."""
    def lin_params(k, fan_in, fan_out):
        k1, k2 = jax.random.split(k)
        bound = 1.0 / jnp.sqrt(fan_in)
        w = jax.random.uniform(k1, (fan_in, fan_out), jnp.float32, -bound, bound)
        b = jax.random.uniform(k2, (fan_out,), jnp.float32, -bound, bound)
        return w, b

    keys = jax.random.split(key, 7)
    p = {}
    p["w1r"], p["b1r"] = lin_params(keys[0], in_channels, hidden_channels)
    p["w1s"], p["b1s"] = lin_params(keys[1], in_channels, hidden_channels)
    p["w2r"], p["b2r"] = lin_params(keys[2], hidden_channels, hidden_channels)
    p["w2s"], p["b2s"] = lin_params(keys[3], hidden_channels, hidden_channels)
    p["w3r"], p["b3r"] = lin_params(keys[4], hidden_channels, out_channels)
    p["w3s"], p["b3s"] = lin_params(keys[5], hidden_channels, out_channels)
    p["g1"] = jnp.ones((hidden_channels,), jnp.float32)
    p["be1"] = jnp.zeros((hidden_channels,), jnp.float32)
    p["g2"] = jnp.ones((hidden_channels,), jnp.float32)
    p["be2"] = jnp.zeros((hidden_channels,), jnp.float32)
    p["g3"] = jnp.ones((out_channels,), jnp.float32)
    p["be3"] = jnp.zeros((out_channels,), jnp.float32)
    p["wl"], p["bl"] = lin_params(keys[6], 2 * hidden_channels + out_channels,
                                  out_channels)
    return p


def pack_params(p, in_channels, hidden_channels, out_channels):
    """Lane-pad to 128, stack rel/root weights, pack per-channel vectors."""
    cin_p = _round_up(in_channels, LANE)
    h_p = _round_up(hidden_channels, LANE)
    o_p = _round_up(out_channels, LANE)
    cmax = max(h_p, o_p)

    def pad_w(w, rows, cols):
        return jnp.pad(w, ((0, rows - w.shape[0]), (0, cols - w.shape[1])))

    def pad_v(v):
        return jnp.pad(v, ((0, cmax - v.shape[0]),))

    q = {}
    q["w1"] = jnp.stack([pad_w(p["w1r"], cin_p, h_p),
                         pad_w(p["w1s"], cin_p, h_p)]).astype(jnp.bfloat16)
    q["w2"] = jnp.stack([pad_w(p["w2r"], h_p, h_p),
                         pad_w(p["w2s"], h_p, h_p)]).astype(jnp.bfloat16)
    q["w3"] = jnp.stack([pad_w(p["w3r"], h_p, o_p),
                         pad_w(p["w3s"], h_p, o_p)]).astype(jnp.bfloat16)

    # Final Linear weight, laid out for the three padded activation slabs.
    H, O = hidden_channels, out_channels
    wl = jnp.zeros((2 * h_p + o_p, o_p), jnp.float32)
    wl = wl.at[0:H, :O].set(p["wl"][0:H])
    wl = wl.at[h_p:h_p + H, :O].set(p["wl"][H:2 * H])
    wl = wl.at[2 * h_p:2 * h_p + O, :O].set(p["wl"][2 * H:])
    q["wl"] = wl.astype(jnp.bfloat16)

    # All per-channel vectors packed into one small (10, cmax) f32 array.
    vecs = [p["b1r"] + p["b1s"], p["g1"], p["be1"],
            p["b2r"] + p["b2s"], p["g2"], p["be2"],
            p["b3r"] + p["b3s"], p["g3"], p["be3"],
            p["bl"]]
    q["vecs"] = jnp.stack([pad_v(v) for v in vecs]).astype(jnp.float32)
    return q


def gnn_forward(x, adj, packed, in_channels, hidden_channels, out_channels):
    B, N, _ = x.shape
    BN = B * N
    BNK = _round_up(BN, LANE)
    cin_p = _round_up(in_channels, LANE)
    h_p = _round_up(hidden_channels, LANE)
    o_p = _round_up(out_channels, LANE)

    # Flattened, padded node features: (BNK, cin_p) with zero padding.
    x_flat = x.reshape(BN, in_channels)
    x_p = jnp.pad(x_flat, ((0, BNK - BN), (0, cin_p - in_channels)))

    # Block-diagonal adjacency over the flattened batch*node axis, zero-padded
    # to a lane-dense (BNK, BNK) square (layout plumbing only).
    eye_b = jnp.eye(B, dtype=adj.dtype)
    adj_bd = jnp.einsum("bc,bij->bicj", eye_b, adj).reshape(BN, BN)
    adj_bd = jnp.pad(adj_bd, ((0, BNK - BN), (0, BNK - BN)))

    args = (x_p, adj_bd, packed["w1"], packed["w2"], packed["w3"],
            packed["wl"], packed["vecs"])

    # VMEM budget: actual footprint (+ bf16 adj copy + activation slabs),
    # capped at 3/4 of physical VMEM (≈48 MiB on v7x, ≈96 MiB on v5e/v6e).
    out_bytes = BNK * o_p * 4
    in_bytes = sum(int(a.size) * a.dtype.itemsize for a in args)
    scratch_est = BNK * BNK * 2 + 10 * BNK * max(h_p, o_p) * 4
    footprint = in_bytes + out_bytes + scratch_est
    try:
        vmem_cap = int(pltpu.get_tpu_info().vmem_capacity_bytes)
    except Exception:
        vmem_cap = 128 * 1024 * 1024
    vmem_limit = int(min(max(2 * footprint, 16 * 1024 * 1024),
                         (3 * vmem_cap) // 4))

    vmem_spec = pl.BlockSpec(memory_space=pltpu.MemorySpace.VMEM)
    out_flat = pl.pallas_call(
        functools.partial(gnn_kernel, valid_rows=BN),
        out_shape=jax.ShapeDtypeStruct((BNK, o_p), jnp.float32),
        in_specs=[vmem_spec] * len(args),
        out_specs=vmem_spec,
        compiler_params=pltpu.CompilerParams(vmem_limit_bytes=vmem_limit),
    )(*args)

    # Slice off row/lane padding outside the kernel.
    return out_flat[:BN, :out_channels].reshape(B, N, out_channels)


if __name__ == "__main__":
    B, N = 2, 16
    in_channels, hidden_channels, out_channels = 8, 32, 32

    key = jax.random.PRNGKey(0)
    kx, kadj, kp = jax.random.split(key, 3)

    x = jax.random.normal(kx, (B, N, in_channels), jnp.float32)
    # Symmetric binary adjacency with self loops.
    raw = jax.random.uniform(kadj, (B, N, N), jnp.float32)
    adj = (raw + jnp.swapaxes(raw, -1, -2) > 1.0).astype(jnp.float32)
    adj = jnp.maximum(adj, jnp.eye(N, dtype=jnp.float32)[None])

    params = init_params(kp, in_channels, hidden_channels, out_channels)
    packed = pack_params(params, in_channels, hidden_channels, out_channels)

    out = gnn_forward(x, adj, packed, in_channels, hidden_channels, out_channels)
    jax.block_until_ready(out)
    assert out.shape == (B, N, out_channels)
    assert bool(jnp.all(jnp.isfinite(out)))
    print("KERNEL_OK")
</pallas_src>

<mosaic_0001>
module attributes {stable_mosaic.version = 11 : i64} {
  func.func @gnn_kernel(%arg0: memref<128x128xf32, #tpu.memory_space<vmem>>, %arg1: memref<128x128xf32, #tpu.memory_space<vmem>>, %arg2: memref<2x128x128xbf16, #tpu.memory_space<vmem>>, %arg3: memref<2x128x128xbf16, #tpu.memory_space<vmem>>, %arg4: memref<2x128x128xbf16, #tpu.memory_space<vmem>>, %arg5: memref<384x128xbf16, #tpu.memory_space<vmem>>, %arg6: memref<10x128xf32, #tpu.memory_space<vmem>>, %arg7: memref<128x128xf32, #tpu.memory_space<vmem>>) attributes {dimension_semantics = [], scalar_prefetch = 0 : i64, scratch_operands = 0 : i64, tpu.core_type = #tpu.core_type<tc>} {
    %0 = tpu.iota {dimensions = array<i32: 0>} : vector<128x1xi32>
    %c32_i32 = arith.constant 32 : i32
    %1 = vector.broadcast %c32_i32 : i32 to vector<128x1xi32>
    %2 = arith.cmpi slt, %0, %1 : vector<128x1xi32>
    %c0 = arith.constant 0 : index
    %c0_0 = arith.constant 0 : index
    %3 = vector.load %arg1[%c0, %c0_0] : memref<128x128xf32, #tpu.memory_space<vmem>>, vector<128x128xf32>
    %cst = arith.constant dense<0.000000e+00> : vector<128xf32>
    %4 = vector.multi_reduction <add>, %3, %cst [1] : vector<128x128xf32> to vector<128xf32>
    %5 = vector.shape_cast %4 : vector<128xf32> to vector<128x1xf32>
    %cst_1 = arith.constant 1.000000e+00 : f32
    %6 = vector.broadcast %cst_1 : f32 to vector<128x1xf32>
    %7 = arith.maximumf %5, %6 : vector<128x1xf32>
    %8 = vector.broadcast %7 : vector<128x1xf32> to vector<128x128xf32>
    %9 = arith.divf %3, %8 : vector<128x128xf32>
    %10 = arith.truncf %9 : vector<128x128xf32> to vector<128x128xbf16>
    %c0_2 = arith.constant 0 : index
    %c0_3 = arith.constant 0 : index
    %11 = vector.load %arg0[%c0_2, %c0_3] : memref<128x128xf32, #tpu.memory_space<vmem>>, vector<128x128xf32>
    %12 = arith.truncf %11 : vector<128x128xf32> to vector<128x128xbf16>
    %c0_4 = arith.constant 0 : index
    %c0_5 = arith.constant 0 : index
    %13 = vector.load %arg6[%c0_4, %c0_5] : memref<10x128xf32, #tpu.memory_space<vmem>>, vector<1x128xf32>
    %c1 = arith.constant 1 : index
    %c0_6 = arith.constant 0 : index
    %14 = vector.load %arg6[%c1, %c0_6] : memref<10x128xf32, #tpu.memory_space<vmem>>, vector<1x128xf32>
    %c2 = arith.constant 2 : index
    %c0_7 = arith.constant 0 : index
    %15 = vector.load %arg6[%c2, %c0_7] : memref<10x128xf32, #tpu.memory_space<vmem>>, vector<1x128xf32>
    %cst_8 = arith.constant dense<0.000000e+00> : vector<128x128xf32>
    %16 = tpu.matmul %10, %12, %cst_8 {dimension_numbers = #tpu.dot_dimension_numbers<[1], [0], [0], [1], [0, 0, 1, 1], [], []>} : vector<128x128xbf16>, vector<128x128xbf16>, vector<128x128xf32> -> vector<128x128xf32>
    %17 = arith.truncf %16 : vector<128x128xf32> to vector<128x128xbf16>
    %c0_9 = arith.constant 0 : index
    %c0_10 = arith.constant 0 : index
    %c0_11 = arith.constant 0 : index
    %18 = vector.load %arg2[%c0_9, %c0_10, %c0_11] : memref<2x128x128xbf16, #tpu.memory_space<vmem>>, vector<1x128x128xbf16>
    %19 = vector.shape_cast %18 : vector<1x128x128xbf16> to vector<128x128xbf16>
    %cst_12 = arith.constant dense<0.000000e+00> : vector<128x128xf32>
    %20 = tpu.matmul %17, %19, %cst_12 {dimension_numbers = #tpu.dot_dimension_numbers<[1], [0], [0], [1], [0, 0, 1, 1], [], []>} : vector<128x128xbf16>, vector<128x128xbf16>, vector<128x128xf32> -> vector<128x128xf32>
    %c1_13 = arith.constant 1 : index
    %c0_14 = arith.constant 0 : index
    %c0_15 = arith.constant 0 : index
    %21 = vector.load %arg2[%c1_13, %c0_14, %c0_15] : memref<2x128x128xbf16, #tpu.memory_space<vmem>>, vector<1x128x128xbf16>
    %22 = vector.shape_cast %21 : vector<1x128x128xbf16> to vector<128x128xbf16>
    %cst_16 = arith.constant dense<0.000000e+00> : vector<128x128xf32>
    %23 = tpu.matmul %12, %22, %cst_16 {dimension_numbers = #tpu.dot_dimension_numbers<[1], [0], [0], [1], [0, 0, 1, 1], [], []>} : vector<128x128xbf16>, vector<128x128xbf16>, vector<128x128xf32> -> vector<128x128xf32>
    %24 = arith.addf %20, %23 : vector<128x128xf32>
    %25 = vector.broadcast %13 : vector<1x128xf32> to vector<128x128xf32>
    %26 = arith.addf %24, %25 : vector<128x128xf32>
    %cst_17 = arith.constant 0.000000e+00 : f32
    %27 = vector.broadcast %cst_17 : f32 to vector<128x128xf32>
    %28 = arith.maximumf %26, %27 : vector<128x128xf32>
    %cst_18 = arith.constant 0.000000e+00 : f32
    %29 = vector.shape_cast %2 : vector<128x1xi1> to vector<128x1xi1>
    %30 = vector.broadcast %29 : vector<128x1xi1> to vector<128x128xi1>
    %31 = vector.broadcast %cst_18 : f32 to vector<128x128xf32>
    %32 = arith.select %30, %28, %31 : vector<128x128xi1>, vector<128x128xf32>
    %33 = arith.mulf %32, %32 : vector<128x128xf32>
    %34 = tpu.concatenate %32, %33 in 1 : vector<128x128xf32>, vector<128x128xf32> -> vector<128x256xf32>
    %cst_19 = arith.constant dense<0.000000e+00> : vector<256xf32>
    %35 = vector.multi_reduction <add>, %34, %cst_19 [0] : vector<128x256xf32> to vector<256xf32>
    %36 = vector.shape_cast %35 : vector<256xf32> to vector<1x256xf32>
    %cst_20 = arith.constant 3.125000e-02 : f32
    %37 = vector.broadcast %cst_20 : f32 to vector<1x256xf32>
    %38 = arith.mulf %36, %37 : vector<1x256xf32>
    %39 = vector.extract_strided_slice %38 {offsets = [0, 0], sizes = [1, 128], strides = [1, 1]} : vector<1x256xf32> to vector<1x128xf32>
    %40 = vector.extract_strided_slice %38 {offsets = [0, 128], sizes = [1, 128], strides = [1, 1]} : vector<1x256xf32> to vector<1x128xf32>
    %41 = arith.mulf %39, %39 : vector<1x128xf32>
    %42 = arith.subf %40, %41 : vector<1x128xf32>
    %cst_21 = arith.constant 0.000000e+00 : f32
    %43 = vector.broadcast %cst_21 : f32 to vector<1x128xf32>
    %44 = arith.maximumf %42, %43 : vector<1x128xf32>
    %cst_22 = arith.constant 9.99999974E-6 : f32
    %45 = vector.broadcast %cst_22 : f32 to vector<1x128xf32>
    %46 = arith.addf %44, %45 : vector<1x128xf32>
    %47 = math.rsqrt %46 : vector<1x128xf32>
    %48 = vector.broadcast %39 : vector<1x128xf32> to vector<128x128xf32>
    %49 = arith.subf %32, %48 : vector<128x128xf32>
    %50 = arith.mulf %47, %14 : vector<1x128xf32>
    %51 = vector.broadcast %50 : vector<1x128xf32> to vector<128x128xf32>
    %52 = arith.mulf %49, %51 : vector<128x128xf32>
    %53 = vector.broadcast %15 : vector<1x128xf32> to vector<128x128xf32>
    %54 = arith.addf %52, %53 : vector<128x128xf32>
    %55 = arith.truncf %54 : vector<128x128xf32> to vector<128x128xbf16>
    %c0_23 = arith.constant 0 : index
    %c0_24 = arith.constant 0 : index
    %56 = vector.load %arg5[%c0_23, %c0_24] : memref<384x128xbf16, #tpu.memory_space<vmem>>, vector<128x128xbf16>
    %cst_25 = arith.constant dense<0.000000e+00> : vector<128x128xf32>
    %57 = tpu.matmul %55, %56, %cst_25 {dimension_numbers = #tpu.dot_dimension_numbers<[1], [0], [0], [1], [0, 0, 1, 1], [], []>} : vector<128x128xbf16>, vector<128x128xbf16>, vector<128x128xf32> -> vector<128x128xf32>
    %c3 = arith.constant 3 : index
    %c0_26 = arith.constant 0 : index
    %58 = vector.load %arg6[%c3, %c0_26] : memref<10x128xf32, #tpu.memory_space<vmem>>, vector<1x128xf32>
    %c4 = arith.constant 4 : index
    %c0_27 = arith.constant 0 : index
    %59 = vector.load %arg6[%c4, %c0_27] : memref<10x128xf32, #tpu.memory_space<vmem>>, vector<1x128xf32>
    %c5 = arith.constant 5 : index
    %c0_28 = arith.constant 0 : index
    %60 = vector.load %arg6[%c5, %c0_28] : memref<10x128xf32, #tpu.memory_space<vmem>>, vector<1x128xf32>
    %cst_29 = arith.constant dense<0.000000e+00> : vector<128x128xf32>
    %61 = tpu.matmul %10, %55, %cst_29 {dimension_numbers = #tpu.dot_dimension_numbers<[1], [0], [0], [1], [0, 0, 1, 1], [], []>} : vector<128x128xbf16>, vector<128x128xbf16>, vector<128x128xf32> -> vector<128x128xf32>
    %62 = arith.truncf %61 : vector<128x128xf32> to vector<128x128xbf16>
    %c0_30 = arith.constant 0 : index
    %c0_31 = arith.constant 0 : index
    %c0_32 = arith.constant 0 : index
    %63 = vector.load %arg3[%c0_30, %c0_31, %c0_32] : memref<2x128x128xbf16, #tpu.memory_space<vmem>>, vector<1x128x128xbf16>
    %64 = vector.shape_cast %63 : vector<1x128x128xbf16> to vector<128x128xbf16>
    %cst_33 = arith.constant dense<0.000000e+00> : vector<128x128xf32>
    %65 = tpu.matmul %62, %64, %cst_33 {dimension_numbers = #tpu.dot_dimension_numbers<[1], [0], [0], [1], [0, 0, 1, 1], [], []>} : vector<128x128xbf16>, vector<128x128xbf16>, vector<128x128xf32> -> vector<128x128xf32>
    %c1_34 = arith.constant 1 : index
    %c0_35 = arith.constant 0 : index
    %c0_36 = arith.constant 0 : index
    %66 = vector.load %arg3[%c1_34, %c0_35, %c0_36] : memref<2x128x128xbf16, #tpu.memory_space<vmem>>, vector<1x128x128xbf16>
    %67 = vector.shape_cast %66 : vector<1x128x128xbf16> to vector<128x128xbf16>
    %cst_37 = arith.constant dense<0.000000e+00> : vector<128x128xf32>
    %68 = tpu.matmul %55, %67, %cst_37 {dimension_numbers = #tpu.dot_dimension_numbers<[1], [0], [0], [1], [0, 0, 1, 1], [], []>} : vector<128x128xbf16>, vector<128x128xbf16>, vector<128x128xf32> -> vector<128x128xf32>
    %69 = arith.addf %65, %68 : vector<128x128xf32>
    %70 = vector.broadcast %58 : vector<1x128xf32> to vector<128x128xf32>
    %71 = arith.addf %69, %70 : vector<128x128xf32>
    %cst_38 = arith.constant 0.000000e+00 : f32
    %72 = vector.broadcast %cst_38 : f32 to vector<128x128xf32>
    %73 = arith.maximumf %71, %72 : vector<128x128xf32>
    %cst_39 = arith.constant 0.000000e+00 : f32
    %74 = vector.shape_cast %2 : vector<128x1xi1> to vector<128x1xi1>
    %75 = vector.broadcast %74 : vector<128x1xi1> to vector<128x128xi1>
    %76 = vector.broadcast %cst_39 : f32 to vector<128x128xf32>
    %77 = arith.select %75, %73, %76 : vector<128x128xi1>, vector<128x128xf32>
    %78 = arith.mulf %77, %77 : vector<128x128xf32>
    %79 = tpu.concatenate %77, %78 in 1 : vector<128x128xf32>, vector<128x128xf32> -> vector<128x256xf32>
    %cst_40 = arith.constant dense<0.000000e+00> : vector<256xf32>
    %80 = vector.multi_reduction <add>, %79, %cst_40 [0] : vector<128x256xf32> to vector<256xf32>
    %81 = vector.shape_cast %80 : vector<256xf32> to vector<1x256xf32>
    %cst_41 = arith.constant 3.125000e-02 : f32
    %82 = vector.broadcast %cst_41 : f32 to vector<1x256xf32>
    %83 = arith.mulf %81, %82 : vector<1x256xf32>
    %84 = vector.extract_strided_slice %83 {offsets = [0, 0], sizes = [1, 128], strides = [1, 1]} : vector<1x256xf32> to vector<1x128xf32>
    %85 = vector.extract_strided_slice %83 {offsets = [0, 128], sizes = [1, 128], strides = [1, 1]} : vector<1x256xf32> to vector<1x128xf32>
    %86 = arith.mulf %84, %84 : vector<1x128xf32>
    %87 = arith.subf %85, %86 : vector<1x128xf32>
    %cst_42 = arith.constant 0.000000e+00 : f32
    %88 = vector.broadcast %cst_42 : f32 to vector<1x128xf32>
    %89 = arith.maximumf %87, %88 : vector<1x128xf32>
    %cst_43 = arith.constant 9.99999974E-6 : f32
    %90 = vector.broadcast %cst_43 : f32 to vector<1x128xf32>
    %91 = arith.addf %89, %90 : vector<1x128xf32>
    %92 = math.rsqrt %91 : vector<1x128xf32>
    %93 = vector.broadcast %84 : vector<1x128xf32> to vector<128x128xf32>
    %94 = arith.subf %77, %93 : vector<128x128xf32>
    %95 = arith.mulf %92, %59 : vector<1x128xf32>
    %96 = vector.broadcast %95 : vector<1x128xf32> to vector<128x128xf32>
    %97 = arith.mulf %94, %96 : vector<128x128xf32>
    %98 = vector.broadcast %60 : vector<1x128xf32> to vector<128x128xf32>
    %99 = arith.addf %97, %98 : vector<128x128xf32>
    %100 = arith.truncf %99 : vector<128x128xf32> to vector<128x128xbf16>
    %c128 = arith.constant 128 : index
    %c0_44 = arith.constant 0 : index
    %101 = vector.load %arg5[%c128, %c0_44] : memref<384x128xbf16, #tpu.memory_space<vmem>>, vector<128x128xbf16>
    %cst_45 = arith.constant dense<0.000000e+00> : vector<128x128xf32>
    %102 = tpu.matmul %100, %101, %cst_45 {dimension_numbers = #tpu.dot_dimension_numbers<[1], [0], [0], [1], [0, 0, 1, 1], [], []>} : vector<128x128xbf16>, vector<128x128xbf16>, vector<128x128xf32> -> vector<128x128xf32>
    %103 = arith.addf %57, %102 : vector<128x128xf32>
    %c6 = arith.constant 6 : index
    %c0_46 = arith.constant 0 : index
    %104 = vector.load %arg6[%c6, %c0_46] : memref<10x128xf32, #tpu.memory_space<vmem>>, vector<1x128xf32>
    %c7 = arith.constant 7 : index
    %c0_47 = arith.constant 0 : index
    %105 = vector.load %arg6[%c7, %c0_47] : memref<10x128xf32, #tpu.memory_space<vmem>>, vector<1x128xf32>
    %c8 = arith.constant 8 : index
    %c0_48 = arith.constant 0 : index
    %106 = vector.load %arg6[%c8, %c0_48] : memref<10x128xf32, #tpu.memory_space<vmem>>, vector<1x128xf32>
    %cst_49 = arith.constant dense<0.000000e+00> : vector<128x128xf32>
    %107 = tpu.matmul %10, %100, %cst_49 {dimension_numbers = #tpu.dot_dimension_numbers<[1], [0], [0], [1], [0, 0, 1, 1], [], []>} : vector<128x128xbf16>, vector<128x128xbf16>, vector<128x128xf32> -> vector<128x128xf32>
    %108 = arith.truncf %107 : vector<128x128xf32> to vector<128x128xbf16>
    %c0_50 = arith.constant 0 : index
    %c0_51 = arith.constant 0 : index
    %c0_52 = arith.constant 0 : index
    %109 = vector.load %arg4[%c0_50, %c0_51, %c0_52] : memref<2x128x128xbf16, #tpu.memory_space<vmem>>, vector<1x128x128xbf16>
    %110 = vector.shape_cast %109 : vector<1x128x128xbf16> to vector<128x128xbf16>
    %cst_53 = arith.constant dense<0.000000e+00> : vector<128x128xf32>
    %111 = tpu.matmul %108, %110, %cst_53 {dimension_numbers = #tpu.dot_dimension_numbers<[1], [0], [0], [1], [0, 0, 1, 1], [], []>} : vector<128x128xbf16>, vector<128x128xbf16>, vector<128x128xf32> -> vector<128x128xf32>
    %c1_54 = arith.constant 1 : index
    %c0_55 = arith.constant 0 : index
    %c0_56 = arith.constant 0 : index
    %112 = vector.load %arg4[%c1_54, %c0_55, %c0_56] : memref<2x128x128xbf16, #tpu.memory_space<vmem>>, vector<1x128x128xbf16>
    %113 = vector.shape_cast %112 : vector<1x128x128xbf16> to vector<128x128xbf16>
    %cst_57 = arith.constant dense<0.000000e+00> : vector<128x128xf32>
    %114 = tpu.matmul %100, %113, %cst_57 {dimension_numbers = #tpu.dot_dimension_numbers<[1], [0], [0], [1], [0, 0, 1, 1], [], []>} : vector<128x128xbf16>, vector<128x128xbf16>, vector<128x128xf32> -> vector<128x128xf32>
    %115 = arith.addf %111, %114 : vector<128x128xf32>
    %116 = vector.broadcast %104 : vector<1x128xf32> to vector<128x128xf32>
    %117 = arith.addf %115, %116 : vector<128x128xf32>
    %cst_58 = arith.constant 0.000000e+00 : f32
    %118 = vector.broadcast %cst_58 : f32 to vector<128x128xf32>
    %119 = arith.maximumf %117, %118 : vector<128x128xf32>
    %cst_59 = arith.constant 0.000000e+00 : f32
    %120 = vector.shape_cast %2 : vector<128x1xi1> to vector<128x1xi1>
    %121 = vector.broadcast %120 : vector<128x1xi1> to vector<128x128xi1>
    %122 = vector.broadcast %cst_59 : f32 to vector<128x128xf32>
    %123 = arith.select %121, %119, %122 : vector<128x128xi1>, vector<128x128xf32>
    %124 = arith.mulf %123, %123 : vector<128x128xf32>
    %125 = tpu.concatenate %123, %124 in 1 : vector<128x128xf32>, vector<128x128xf32> -> vector<128x256xf32>
    %cst_60 = arith.constant dense<0.000000e+00> : vector<256xf32>
    %126 = vector.multi_reduction <add>, %125, %cst_60 [0] : vector<128x256xf32> to vector<256xf32>
    %127 = vector.shape_cast %126 : vector<256xf32> to vector<1x256xf32>
    %cst_61 = arith.constant 3.125000e-02 : f32
    %128 = vector.broadcast %cst_61 : f32 to vector<1x256xf32>
    %129 = arith.mulf %127, %128 : vector<1x256xf32>
    %130 = vector.extract_strided_slice %129 {offsets = [0, 0], sizes = [1, 128], strides = [1, 1]} : vector<1x256xf32> to vector<1x128xf32>
    %131 = vector.extract_strided_slice %129 {offsets = [0, 128], sizes = [1, 128], strides = [1, 1]} : vector<1x256xf32> to vector<1x128xf32>
    %132 = arith.mulf %130, %130 : vector<1x128xf32>
    %133 = arith.subf %131, %132 : vector<1x128xf32>
    %cst_62 = arith.constant 0.000000e+00 : f32
    %134 = vector.broadcast %cst_62 : f32 to vector<1x128xf32>
    %135 = arith.maximumf %133, %134 : vector<1x128xf32>
    %cst_63 = arith.constant 9.99999974E-6 : f32
    %136 = vector.broadcast %cst_63 : f32 to vector<1x128xf32>
    %137 = arith.addf %135, %136 : vector<1x128xf32>
    %138 = math.rsqrt %137 : vector<1x128xf32>
    %139 = vector.broadcast %130 : vector<1x128xf32> to vector<128x128xf32>
    %140 = arith.subf %123, %139 : vector<128x128xf32>
    %141 = arith.mulf %138, %105 : vector<1x128xf32>
    %142 = vector.broadcast %141 : vector<1x128xf32> to vector<128x128xf32>
    %143 = arith.mulf %140, %142 : vector<128x128xf32>
    %144 = vector.broadcast %106 : vector<1x128xf32> to vector<128x128xf32>
    %145 = arith.addf %143, %144 : vector<128x128xf32>
    %146 = arith.truncf %145 : vector<128x128xf32> to vector<128x128xbf16>
    %c256 = arith.constant 256 : index
    %c0_64 = arith.constant 0 : index
    %147 = vector.load %arg5[%c256, %c0_64] : memref<384x128xbf16, #tpu.memory_space<vmem>>, vector<128x128xbf16>
    %cst_65 = arith.constant dense<0.000000e+00> : vector<128x128xf32>
    %148 = tpu.matmul %146, %147, %cst_65 {dimension_numbers = #tpu.dot_dimension_numbers<[1], [0], [0], [1], [0, 0, 1, 1], [], []>} : vector<128x128xbf16>, vector<128x128xbf16>, vector<128x128xf32> -> vector<128x128xf32>
    %149 = arith.addf %103, %148 : vector<128x128xf32>
    %c9 = arith.constant 9 : index
    %c0_66 = arith.constant 0 : index
    %150 = vector.load %arg6[%c9, %c0_66] : memref<10x128xf32, #tpu.memory_space<vmem>>, vector<1x128xf32>
    %151 = vector.broadcast %150 : vector<1x128xf32> to vector<128x128xf32>
    %152 = arith.addf %149, %151 : vector<128x128xf32>
    %cst_67 = arith.constant 0.000000e+00 : f32
    %153 = vector.broadcast %cst_67 : f32 to vector<128x128xf32>
    %154 = arith.maximumf %152, %153 : vector<128x128xf32>
    %c0_68 = arith.constant 0 : index
    %c0_69 = arith.constant 0 : index
    %155 = vector.load %arg7[%c0_68, %c0_69] : memref<128x128xf32, #tpu.memory_space<vmem>>, vector<128x128xf32>
    tpu.vector_store %arg7[%c0_68, %c0_69], %154 {strides = array<i32>} : memref<128x128xf32, #tpu.memory_space<vmem>>, vector<128x128xf32>,
    return
  }
}

</mosaic_0001>

<llo_original>
// kernel: tpu_custom_call.1
$region0: #{tpu_custom_call.1}
  #allocation0 [shape = 'u32[]', space=smem, size = 0x4, offset = 0x4, fixed_abs, tag = 'smem constant byte address 0x4 - core index']
  #allocation1 [shape = 'u32[144,128]{1,0:T(1,128)}', space=vmem, size = 0x12000, scoped, tag = 'internal scratch']
  %s0 = inlined_call_operand.hbm [shape: f32[128,128], index: 0, kind: input, shape index: {}]
  %s1 = inlined_call_operand.hbm [shape: f32[128,128], index: 1, kind: input, shape index: {}]
  %s2 = inlined_call_operand.hbm [shape: bf16[2,128,128], index: 2, kind: input, shape index: {}]
  %s3 = inlined_call_operand.hbm [shape: bf16[2,128,128], index: 3, kind: input, shape index: {}]
  %s4 = inlined_call_operand.hbm [shape: bf16[2,128,128], index: 4, kind: input, shape index: {}]
  %s5 = inlined_call_operand.hbm [shape: bf16[384,128], index: 5, kind: input, shape index: {}]
  %s6 = inlined_call_operand.hbm [shape: f32[10,128], index: 6, kind: input, shape index: {}]
  %s7 = inlined_call_operand.hbm [shape: f32[128,128], index: 7, kind: output, shape index: {}]
  %s8 = sld [smem:[#allocation0]]
  $region66: #{tpu_custom_call.1} parent=0
    _
  %s10 = ssub.s32 1, %s8
  %s11 = scalar_select 0, %s10, %s8
  $region1: #{tpu_custom_call.1} parent=0
    #allocation2 [shape = 'u8[65536]{0}', space=vmem, size = 0x10000, scoped, tag = 'input window, operand 0, single buffered']
    #allocation3 [shape = 's32[1]{0}', space=sflag, size = 0x4, scoped, tag = 'scoped memory for tpu_custom_call.1']
    #allocation4 [shape = 's32[1]{0}', space=sflag, size = 0x4, scoped, tag = 'scoped memory for tpu_custom_call.1']
    #allocation5 [shape = 'u8[65536]{0}', space=vmem, size = 0x10000, scoped, tag = 'input window, operand 1, single buffered']
    #allocation6 [shape = 's32[1]{0}', space=sflag, size = 0x4, scoped, tag = 'scoped memory for tpu_custom_call.1']
    #allocation7 [shape = 'u8[65536]{0}', space=vmem, size = 0x10000, scoped, tag = 'input window, operand 2, single buffered']
    #allocation8 [shape = 'u8[65536]{0}', space=vmem, size = 0x10000, scoped, tag = 'input window, operand 3, single buffered']
    #allocation9 [shape = 's32[1]{0}', space=sflag, size = 0x4, scoped, tag = 'scoped memory for tpu_custom_call.1']
    #allocation10 [shape = 'u8[65536]{0}', space=vmem, size = 0x10000, scoped, tag = 'input window, operand 4, single buffered']
    #allocation11 [shape = 'u8[98304]{0}', space=vmem, size = 0x18000, scoped, tag = 'input window, operand 5, single buffered']
    #allocation12 [shape = 's32[1]{0}', space=sflag, size = 0x4, scoped, tag = 'scoped memory for tpu_custom_call.1']
    #allocation13 [shape = 'u8[8192]{0}', space=vmem, size = 0x2000, scoped, tag = 'input window, operand 6, single buffered']
    #allocation14 [shape = 'u8[65536]{0}', space=vmem, size = 0x10000, scoped, tag = 'output window, operand 0, single buffered']
    %12 = vsyncpa [#allocation3], 0
    %13 = vsyncpa [#allocation6], 0
    %14 = vsyncpa [#allocation9], 0
    %15 = vsyncpa [#allocation12], 0
    %16 = vsyncpa [#allocation4], 0
    // Predicated region
    $region2: #{tpu_custom_call.1} parent=1 // pred_check
      _
    $region3: #{tpu_custom_call.1} parent=1 // pred_check_branch
      %18 = sbr.rel (0) target = $region5
    $region4: #{tpu_custom_call.1} parent=1 // pred_region
      %s20 = ssub.s32 2048, 2048
      %21 = vsyncadd [#allocation3], %s20
      %s22 = sshll.u32 [#allocation2], 4
      %s23 = int_to_ptr.vmem [resolvable:$true] %s22
      %28 = dma.hbm_to_vmem [thread:$0]  %s0, 2048, %s23, [#allocation3], 128, 128, 8
    $region5: #{tpu_custom_call.1} parent=1 // pred_fallthru
      _
    // Predicated region
    $region6: #{tpu_custom_call.1} parent=1 // pred_check
      _
    $region7: #{tpu_custom_call.1} parent=1 // pred_check_branch
      %30 = sbr.rel (0) target = $region9
    $region8: #{tpu_custom_call.1} parent=1 // pred_region
      %s32 = ssub.s32 2048, 2048
      %33 = vsyncadd [#allocation6], %s32
      %s34 = sshll.u32 [#allocation5], 4
      %s35 = int_to_ptr.vmem [resolvable:$true] %s34
      %40 = dma.hbm_to_vmem [thread:$0]  %s1, 2048, %s35, [#allocation6], 128, 128, 8
    $region9: #{tpu_custom_call.1} parent=1 // pred_fallthru
      _
    // Predicated region
    $region10: #{tpu_custom_call.1} parent=1 // pred_check
      _
    $region11: #{tpu_custom_call.1} parent=1 // pred_check_branch
      %42 = sbr.rel (0) target = $region13
    $region12: #{tpu_custom_call.1} parent=1 // pred_region
      %s44 = ssub.s32 2048, 2048
      %45 = vsyncadd [#allocation6], %s44
      %s46 = sshll.u32 [#allocation7], 4
      %s47 = int_to_ptr.vmem [resolvable:$true] %s46
      %52 = dma.hbm_to_vmem [thread:$0]  %s2, 2048, %s47, [#allocation6], 64, 64, 4
    $region13: #{tpu_custom_call.1} parent=1 // pred_fallthru
      _
    // Predicated region
    $region14: #{tpu_custom_call.1} parent=1 // pred_check
      _
    $region15: #{tpu_custom_call.1} parent=1 // pred_check_branch
      %54 = sbr.rel (0) target = $region17
    $region16: #{tpu_custom_call.1} parent=1 // pred_region
      %s56 = ssub.s32 2048, 2048
      %57 = vsyncadd [#allocation9], %s56
      %s58 = sshll.u32 [#allocation8], 4
      %s59 = int_to_ptr.vmem [resolvable:$true] %s58
      %64 = dma.hbm_to_vmem [thread:$0]  %s3, 2048, %s59, [#allocation9], 64, 64, 4
    $region17: #{tpu_custom_call.1} parent=1 // pred_fallthru
      _
    // Predicated region
    $region18: #{tpu_custom_call.1} parent=1 // pred_check
      _
    $region19: #{tpu_custom_call.1} parent=1 // pred_check_branch
      %66 = sbr.rel (0) target = $region21
    $region20: #{tpu_custom_call.1} parent=1 // pred_region
      %s68 = ssub.s32 2048, 2048
      %69 = vsyncadd [#allocation9], %s68
      %s70 = sshll.u32 [#allocation10], 4
      %s71 = int_to_ptr.vmem [resolvable:$true] %s70
      %76 = dma.hbm_to_vmem [thread:$0]  %s4, 2048, %s71, [#allocation9], 64, 64, 4
    $region21: #{tpu_custom_call.1} parent=1 // pred_fallthru
      _
    // Predicated region
    $region22: #{tpu_custom_call.1} parent=1 // pred_check
      _
    $region23: #{tpu_custom_call.1} parent=1 // pred_check_branch
      %78 = sbr.rel (0) target = $region25
    $region24: #{tpu_custom_call.1} parent=1 // pred_region
      %s80 = ssub.s32 3072, 3072
      %81 = vsyncadd [#allocation12], %s80
      %s82 = sshll.u32 [#allocation11], 4
      %s83 = int_to_ptr.vmem [resolvable:$true] %s82
      %88 = dma.hbm_to_vmem [thread:$0]  %s5, 3072, %s83, [#allocation12], 64, 64, 4
    $region25: #{tpu_custom_call.1} parent=1 // pred_fallthru
      _
    // Predicated region
    $region26: #{tpu_custom_call.1} parent=1 // pred_check
      _
    $region27: #{tpu_custom_call.1} parent=1 // pred_check_branch
      %90 = sbr.rel (0) target = $region29
    $region28: #{tpu_custom_call.1} parent=1 // pred_region
      %s92 = ssub.s32 256, 256
      %93 = vsyncadd [#allocation12], %s92
      %s94 = sshll.u32 [#allocation13], 4
      %s95 = int_to_ptr.vmem [resolvable:$true] %s94
      %100 = dma.hbm_to_vmem [thread:$0]  %s6, 256, %s95, [#allocation12], 128, 128, 8
    $region29: #{tpu_custom_call.1} parent=1 // pred_fallthru
      _
    // Predicated region
    $region30: #{tpu_custom_call.1} parent=1 // pred_check
      _
    $region31: #{tpu_custom_call.1} parent=1 // pred_check_branch
      %102 = sbr.rel (0) target = $region33
    $region32: #{tpu_custom_call.1} parent=1 // pred_region
      %103 = dma.done [#allocation3], 2048
    $region33: #{tpu_custom_call.1} parent=1 // pred_fallthru
      _
    // Predicated region
    $region34: #{tpu_custom_call.1} parent=1 // pred_check
      _
    $region35: #{tpu_custom_call.1} parent=1 // pred_check_branch
      %105 = sbr.rel (0) target = $region37
    $region36: #{tpu_custom_call.1} parent=1 // pred_region
      %106 = dma.done [#allocation6], 2048
    $region37: #{tpu_custom_call.1} parent=1 // pred_fallthru
      _
    // Predicated region
    $region38: #{tpu_custom_call.1} parent=1 // pred_check
      _
    $region39: #{tpu_custom_call.1} parent=1 // pred_check_branch
      %108 = sbr.rel (0) target = $region41
    $region40: #{tpu_custom_call.1} parent=1 // pred_region
      %109 = dma.done [#allocation6], 2048
    $region41: #{tpu_custom_call.1} parent=1 // pred_fallthru
      _
    // Predicated region
    $region42: #{tpu_custom_call.1} parent=1 // pred_check
      _
    $region43: #{tpu_custom_call.1} parent=1 // pred_check_branch
      %111 = sbr.rel (0) target = $region45
    $region44: #{tpu_custom_call.1} parent=1 // pred_region
      %112 = dma.done [#allocation9], 2048
    $region45: #{tpu_custom_call.1} parent=1 // pred_fallthru
      _
    // Predicated region
    $region46: #{tpu_custom_call.1} parent=1 // pred_check
      _
    $region47: #{tpu_custom_call.1} parent=1 // pred_check_branch
      %114 = sbr.rel (0) target = $region49
    $region48: #{tpu_custom_call.1} parent=1 // pred_region
      %115 = dma.done [#allocation9], 2048
    $region49: #{tpu_custom_call.1} parent=1 // pred_fallthru
      _
    // Predicated region
    $region50: #{tpu_custom_call.1} parent=1 // pred_check
      _
    $region51: #{tpu_custom_call.1} parent=1 // pred_check_branch
      %117 = sbr.rel (0) target = $region53
    $region52: #{tpu_custom_call.1} parent=1 // pred_region
      %118 = dma.done [#allocation12], 3072
    $region53: #{tpu_custom_call.1} parent=1 // pred_fallthru
      _
    // Predicated region
    $region54: #{tpu_custom_call.1} parent=1 // pred_check
      _
    $region55: #{tpu_custom_call.1} parent=1 // pred_check_branch
      %120 = sbr.rel (0) target = $region57
    $region56: #{tpu_custom_call.1} parent=1 // pred_region
      %121 = dma.done [#allocation12], 256
    $region57: #{tpu_custom_call.1} parent=1 // pred_fallthru
      _
    %v123 = vlaneseq
    %v124 = vshrl.u32 %v123, 7
    %v125 = vadd.s32 %v124, 8
    %v126 = vadd.s32 %v124, 16
    %v127 = vadd.s32 %v124, 24
    %v128 = vadd.s32 %v124, 32
    %v129 = vadd.s32 %v124, 40
    %v130 = vadd.s32 %v124, 48
    %v131 = vadd.s32 %v124, 56
    %v132 = vadd.s32 %v124, 64
    %v133 = vadd.s32 %v124, 72
    %v134 = vadd.s32 %v124, 80
    %v135 = vadd.s32 %v124, 88
    %v136 = vadd.s32 %v124, 96
    %v137 = vadd.s32 %v124, 104
    %v138 = vadd.s32 %v124, 112
    %v139 = vadd.s32 %v124, 120
    %vm140 = vcmp.lt.s32.totalorder %v124, 32
    %vm141 = vcmp.lt.s32.totalorder %v125, 32
    %vm142 = vcmp.lt.s32.totalorder %v126, 32
    %vm143 = vcmp.lt.s32.totalorder %v127, 32
    %vm144 = vcmp.lt.s32.totalorder %v128, 32
    %vm145 = vcmp.lt.s32.totalorder %v129, 32
    %vm146 = vcmp.lt.s32.totalorder %v130, 32
    %vm147 = vcmp.lt.s32.totalorder %v131, 32
    %vm148 = vcmp.lt.s32.totalorder %v132, 32
    %vm149 = vcmp.lt.s32.totalorder %v133, 32
    %vm150 = vcmp.lt.s32.totalorder %v134, 32
    %vm151 = vcmp.lt.s32.totalorder %v135, 32
    %vm152 = vcmp.lt.s32.totalorder %v136, 32
    %vm153 = vcmp.lt.s32.totalorder %v137, 32
    %vm154 = vcmp.lt.s32.totalorder %v138, 32
    %vm155 = vcmp.lt.s32.totalorder %v139, 32
    %v156 = vld [vmem:[#allocation5] sm:$0xff]
    %v157 = vld [vmem:[#allocation5 + $0x8] sm:$0xff]
    %v158 = vld [vmem:[#allocation5 + $0x10] sm:$0xff]
    %v159 = vld [vmem:[#allocation5 + $0x18] sm:$0xff]
    %v160 = vld [vmem:[#allocation5 + $0x20] sm:$0xff]
    %v161 = vld [vmem:[#allocation5 + $0x28] sm:$0xff]
    %v162 = vld [vmem:[#allocation5 + $0x30] sm:$0xff]
    %v163 = vld [vmem:[#allocation5 + $0x38] sm:$0xff]
    %v164 = vld [vmem:[#allocation5 + $0x40] sm:$0xff]
    %v165 = vld [vmem:[#allocation5 + $0x48] sm:$0xff]
    %v166 = vld [vmem:[#allocation5 + $0x50] sm:$0xff]
    %v167 = vld [vmem:[#allocation5 + $0x58] sm:$0xff]
    %v168 = vld [vmem:[#allocation5 + $0x60] sm:$0xff]
    %v169 = vld [vmem:[#allocation5 + $0x68] sm:$0xff]
    %v170 = vld [vmem:[#allocation5 + $0x70] sm:$0xff]
    %v171 = vld [vmem:[#allocation5 + $0x78] sm:$0xff]
    %172 = vadd.xlane.f32.xlu0 %v156
    %v173 = vpop.xlane.xlu0 %172
    %174 = vadd.xlane.f32.xlu0 %v157
    %v175 = vpop.xlane.xlu0 %174
    %176 = vadd.xlane.f32.xlu0 %v158
    %v177 = vpop.xlane.xlu0 %176
    %178 = vadd.xlane.f32.xlu0 %v159
    %v179 = vpop.xlane.xlu0 %178
    %180 = vadd.xlane.f32.xlu0 %v160
    %v181 = vpop.xlane.xlu0 %180
    %182 = vadd.xlane.f32.xlu0 %v161
    %v183 = vpop.xlane.xlu0 %182
    %184 = vadd.xlane.f32.xlu0 %v162
    %v185 = vpop.xlane.xlu0 %184
    %186 = vadd.xlane.f32.xlu0 %v163
    %v187 = vpop.xlane.xlu0 %186
    %188 = vadd.xlane.f32.xlu0 %v164
    %v189 = vpop.xlane.xlu0 %188
    %190 = vadd.xlane.f32.xlu0 %v165
    %v191 = vpop.xlane.xlu0 %190
    %192 = vadd.xlane.f32.xlu0 %v166
    %v193 = vpop.xlane.xlu0 %192
    %194 = vadd.xlane.f32.xlu0 %v167
    %v195 = vpop.xlane.xlu0 %194
    %196 = vadd.xlane.f32.xlu0 %v168
    %v197 = vpop.xlane.xlu0 %196
    %198 = vadd.xlane.f32.xlu0 %v169
    %v199 = vpop.xlane.xlu0 %198
    %200 = vadd.xlane.f32.xlu0 %v170
    %v201 = vpop.xlane.xlu0 %200
    %202 = vadd.xlane.f32.xlu0 %v171
    %v203 = vpop.xlane.xlu0 %202
    %v204 = vmax.f32 %v173, 1.0
    %v205 = vmax.f32 %v175, 1.0
    %v206 = vmax.f32 %v177, 1.0
    %v207 = vmax.f32 %v179, 1.0
    %v208 = vmax.f32 %v181, 1.0
    %v209 = vmax.f32 %v183, 1.0
    %v210 = vmax.f32 %v185, 1.0
    %v211 = vmax.f32 %v187, 1.0
    %v212 = vmax.f32 %v189, 1.0
    %v213 = vmax.f32 %v191, 1.0
    %v214 = vmax.f32 %v193, 1.0
    %v215 = vmax.f32 %v195, 1.0
    %v216 = vmax.f32 %v197, 1.0
    %v217 = vmax.f32 %v199, 1.0
    %v218 = vmax.f32 %v201, 1.0
    %v219 = vmax.f32 %v203, 1.0
    %v220 = vrcp.pop %v204
    %v221 = vmul.f32 %v156, %v220
    %v222 = vrcp.pop %v205
    %v223 = vmul.f32 %v157, %v222
    %v224 = vrcp.pop %v206
    %v225 = vmul.f32 %v158, %v224
    %v226 = vrcp.pop %v207
    %v227 = vmul.f32 %v159, %v226
    %v228 = vrcp.pop %v208
    %v229 = vmul.f32 %v160, %v228
    %v230 = vrcp.pop %v209
    %v231 = vmul.f32 %v161, %v230
    %v232 = vrcp.pop %v210
    %v233 = vmul.f32 %v162, %v232
    %v234 = vrcp.pop %v211
    %v235 = vmul.f32 %v163, %v234
    %v236 = vrcp.pop %v212
    %v237 = vmul.f32 %v164, %v236
    %v238 = vrcp.pop %v213
    %v239 = vmul.f32 %v165, %v238
    %v240 = vrcp.pop %v214
    %v241 = vmul.f32 %v166, %v240
    %v242 = vrcp.pop %v215
    %v243 = vmul.f32 %v167, %v242
    %v244 = vrcp.pop %v216
    %v245 = vmul.f32 %v168, %v244
    %v246 = vrcp.pop %v217
    %v247 = vmul.f32 %v169, %v246
    %v248 = vrcp.pop %v218
    %v249 = vmul.f32 %v170, %v248
    %v250 = vrcp.pop %v219
    %v251 = vmul.f32 %v171, %v250
    %v252 = vpack.c.bf16 %v223, %v221
    %v253 = vpack.c.bf16 %v227, %v225
    %v254 = vpack.c.bf16 %v231, %v229
    %v255 = vpack.c.bf16 %v235, %v233
    %v256 = vpack.c.bf16 %v239, %v237
    %v257 = vpack.c.bf16 %v243, %v241
    %v258 = vpack.c.bf16 %v247, %v245
    %v259 = vpack.c.bf16 %v251, %v249
    %v260 = vld [vmem:[#allocation2] sm:$0xff]
    %v261 = vld [vmem:[#allocation2 + $0x8] sm:$0xff]
    %v262 = vld [vmem:[#allocation2 + $0x10] sm:$0xff]
    %v263 = vld [vmem:[#allocation2 + $0x18] sm:$0xff]
    %v264 = vld [vmem:[#allocation2 + $0x20] sm:$0xff]
    %v265 = vld [vmem:[#allocation2 + $0x28] sm:$0xff]
    %v266 = vld [vmem:[#allocation2 + $0x30] sm:$0xff]
    %v267 = vld [vmem:[#allocation2 + $0x38] sm:$0xff]
    %v268 = vld [vmem:[#allocation2 + $0x40] sm:$0xff]
    %v269 = vld [vmem:[#allocation2 + $0x48] sm:$0xff]
    %v270 = vld [vmem:[#allocation2 + $0x50] sm:$0xff]
    %v271 = vld [vmem:[#allocation2 + $0x58] sm:$0xff]
    %v272 = vld [vmem:[#allocation2 + $0x60] sm:$0xff]
    %v273 = vld [vmem:[#allocation2 + $0x68] sm:$0xff]
    %v274 = vld [vmem:[#allocation2 + $0x70] sm:$0xff]
    %v275 = vld [vmem:[#allocation2 + $0x78] sm:$0xff]
    %v276 = vpack.c.bf16 %v261, %v260
    %v277 = vpack.c.bf16 %v263, %v262
    %v278 = vpack.c.bf16 %v265, %v264
    %v279 = vpack.c.bf16 %v267, %v266
    %v280 = vpack.c.bf16 %v269, %v268
    %v281 = vpack.c.bf16 %v271, %v270
    %v282 = vpack.c.bf16 %v273, %v272
    %v283 = vpack.c.bf16 %v275, %v274
    %v284 = vld [vmem:[#allocation13] sm:$0x1]
    %v285 = vld [vmem:[#allocation13 + $0x1] sm:$0x1]
    %v286 = vld [vmem:[#allocation13 + $0x2] sm:$0x1]
    %287 = vmatprep.subr.bf16.mxu0 0
    %288 = vmatpush1.bf16.msra.mxu0 %v283
    %289 = vmatprep.subr.bf16.mxu0 0
    %290 = vmatpush1.bf16.msra.mxu0 %v282
    %291 = vmatprep.subr.bf16.mxu0 0
    %292 = vmatpush1.bf16.msra.mxu0 %v281
    %293 = vmatprep.subr.bf16.mxu0 0
    %294 = vmatpush1.bf16.msra.mxu0 %v280
    %295 = vmatprep.subr.bf16.mxu0 0
    %296 = vmatpush1.bf16.msra.mxu0 %v279
    %297 = vmatprep.subr.bf16.mxu0 0
    %298 = vmatpush1.bf16.msra.mxu0 %v278
    %299 = vmatprep.subr.bf16.mxu0 0
    %300 = vmatpush1.bf16.msra.mxu0 %v277
    %301 = vmatprep.subr.bf16.mxu0 0
    %302 = vmatpush1.bf16.msra.mxu0 %v276
    %303 = vmatprep.subr.bf16.mxu0 0
    %304 = vmatpush2.bf16.msra.mxu0 0
    %305 = vmatprep.subr.bf16.mxu0 0
    %306 = vmatpush2.bf16.msra.mxu0 0
    %307 = vmatprep.subr.bf16.mxu0 0
    %308 = vmatpush2.bf16.msra.mxu0 0
    %309 = vmatprep.subr.bf16.mxu0 0
    %310 = vmatpush2.bf16.msra.mxu0 0
    %311 = vmatprep.subr.bf16.mxu0 0
    %312 = vmatpush2.bf16.msra.mxu0 0
    %313 = vmatprep.subr.bf16.mxu0 0
    %314 = vmatpush2.bf16.msra.mxu0 0
    %315 = vmatprep.subr.bf16.mxu0 0
    %316 = vmatpush2.bf16.msra.mxu0 0
    %317 = vmatprep.subr.bf16.mxu0 0
    %318 = vmatpush2.bf16.msra.mxu0 0
    %319 = vmatprep.mubr.bf16.mxu0 0
    %320 = vmatmul.mubr.bf16.gmra.mxu0 %v252
    %v321 = vpop.f32.mrf.mxu0
    %v322 = vadd.f32 0.0, %v321
    %v323 = vpop.f32.mrf.mxu0
    %v324 = vpop.f32.mrf.mxu0
    %v325 = vadd.f32 0.0, %v324
    %v326 = vpop.f32.mrf.mxu0
    %327 = vmatprep.mubr.bf16.mxu0 0
    %328 = vmatmul.mubr.bf16.gmra.mxu0 %v253
    %v329 = vpop.f32.mrf.mxu0
    %v330 = vadd.f32 0.0, %v329
    %v331 = vpop.f32.mrf.mxu0
    %v332 = vpop.f32.mrf.mxu0
    %v333 = vadd.f32 0.0, %v332
    %v334 = vpop.f32.mrf.mxu0
    %335 = vmatprep.mubr.bf16.mxu0 0
    %336 = vmatmul.mubr.bf16.gmra.mxu0 %v254
    %v337 = vpop.f32.mrf.mxu0
    %v338 = vadd.f32 0.0, %v337
    %v339 = vpop.f32.mrf.mxu0
    %v340 = vpop.f32.mrf.mxu0
    %v341 = vadd.f32 0.0, %v340
    %v342 = vpop.f32.mrf.mxu0
    %343 = vmatprep.mubr.bf16.mxu0 0
    %344 = vmatmul.mubr.bf16.gmra.mxu0 %v255
    %v345 = vpop.f32.mrf.mxu0
    %v346 = vadd.f32 0.0, %v345
    %v347 = vpop.f32.mrf.mxu0
    %v348 = vpop.f32.mrf.mxu0
    %v349 = vadd.f32 0.0, %v348
    %v350 = vpop.f32.mrf.mxu0
    %351 = vmatprep.mubr.bf16.mxu0 0
    %352 = vmatmul.mubr.bf16.gmra.mxu0 %v256
    %v353 = vpop.f32.mrf.mxu0
    %v354 = vadd.f32 0.0, %v353
    %v355 = vpop.f32.mrf.mxu0
    %v356 = vpop.f32.mrf.mxu0
    %v357 = vadd.f32 0.0, %v356
    %v358 = vpop.f32.mrf.mxu0
    %359 = vmatprep.mubr.bf16.mxu0 0
    %360 = vmatmul.mubr.bf16.gmra.mxu0 %v257
    %v361 = vpop.f32.mrf.mxu0
    %v362 = vadd.f32 0.0, %v361
    %v363 = vpop.f32.mrf.mxu0
    %v364 = vpop.f32.mrf.mxu0
    %v365 = vadd.f32 0.0, %v364
    %v366 = vpop.f32.mrf.mxu0
    %367 = vmatprep.mubr.bf16.mxu0 0
    %368 = vmatmul.mubr.bf16.gmra.mxu0 %v258
    %v369 = vpop.f32.mrf.mxu0
    %v370 = vadd.f32 0.0, %v369
    %v371 = vpop.f32.mrf.mxu0
    %v372 = vpop.f32.mrf.mxu0
    %v373 = vadd.f32 0.0, %v372
    %v374 = vpop.f32.mrf.mxu0
    %375 = vmatprep.mubr.bf16.mxu0 0
    %376 = vmatmul.mubr.bf16.gmra.mxu0 %v259
    %v377 = vpop.f32.mrf.mxu0
    %v378 = vadd.f32 0.0, %v377
    %v379 = vpop.f32.mrf.mxu0
    %v380 = vpop.f32.mrf.mxu0
    %v381 = vadd.f32 0.0, %v380
    %v382 = vpop.f32.mrf.mxu0
    %383 = vdwg.mxu0
    %v384 = vpack.c.bf16 %v325, %v322
    %v385 = vpack.c.bf16 %v333, %v330
    %v386 = vpack.c.bf16 %v341, %v338
    %v387 = vpack.c.bf16 %v349, %v346
    %v388 = vpack.c.bf16 %v357, %v354
    %v389 = vpack.c.bf16 %v365, %v362
    %v390 = vpack.c.bf16 %v373, %v370
    %v391 = vpack.c.bf16 %v381, %v378
    %v392 = vld [vmem:[#allocation7] sm:$0xf]
    %v393 = vld [vmem:[#allocation7 + $0x4] sm:$0xf]
    %v394 = vld [vmem:[#allocation7 + $0x8] sm:$0xf]
    %v395 = vld [vmem:[#allocation7 + $0xc] sm:$0xf]
    %v396 = vld [vmem:[#allocation7 + $0x10] sm:$0xf]
    %v397 = vld [vmem:[#allocation7 + $0x14] sm:$0xf]
    %v398 = vld [vmem:[#allocation7 + $0x18] sm:$0xf]
    %v399 = vld [vmem:[#allocation7 + $0x1c] sm:$0xf]
    %v400 = vld [vmem:[#allocation7 + $0x20] sm:$0xf]
    %v401 = vld [vmem:[#allocation7 + $0x24] sm:$0xf]
    %v402 = vld [vmem:[#allocation7 + $0x28] sm:$0xf]
    %v403 = vld [vmem:[#allocation7 + $0x2c] sm:$0xf]
    %v404 = vld [vmem:[#allocation7 + $0x30] sm:$0xf]
    %v405 = vld [vmem:[#allocation7 + $0x34] sm:$0xf]
    %v406 = vld [vmem:[#allocation7 + $0x38] sm:$0xf]
    %v407 = vld [vmem:[#allocation7 + $0x3c] sm:$0xf]
    %s408 = scalar_lea.vmem [#allocation7], 64
    %v409 = vld [vmem:[%s408] sm:$0xf]
    %v410 = vld [vmem:[%s408 + $0x4] sm:$0xf]
    %v411 = vld [vmem:[%s408 + $0x8] sm:$0xf]
    %v412 = vld [vmem:[%s408 + $0xc] sm:$0xf]
    %v413 = vld [vmem:[%s408 + $0x10] sm:$0xf]
    %v414 = vld [vmem:[%s408 + $0x14] sm:$0xf]
    %v415 = vld [vmem:[%s408 + $0x18] sm:$0xf]
    %v416 = vld [vmem:[%s408 + $0x1c] sm:$0xf]
    %v417 = vld [vmem:[%s408 + $0x20] sm:$0xf]
    %v418 = vld [vmem:[%s408 + $0x24] sm:$0xf]
    %v419 = vld [vmem:[%s408 + $0x28] sm:$0xf]
    %v420 = vld [vmem:[%s408 + $0x2c] sm:$0xf]
    %v421 = vld [vmem:[%s408 + $0x30] sm:$0xf]
    %v422 = vld [vmem:[%s408 + $0x34] sm:$0xf]
    %v423 = vld [vmem:[%s408 + $0x38] sm:$0xf]
    %v424 = vld [vmem:[%s408 + $0x3c] sm:$0xf]
    %v441 = vunpack.c.l.b16 %v409
    %v442 = vunpack.c.l.b16 %v410
    %v443 = vunpack.c.l.b16 %v411
    %v444 = vunpack.c.l.b16 %v412
    %v445 = vunpack.c.l.b16 %v413
    %v446 = vunpack.c.l.b16 %v414
    %v447 = vunpack.c.l.b16 %v415
    %v448 = vunpack.c.l.b16 %v416
    %v449 = vunpack.c.l.b16 %v417
    %v450 = vunpack.c.l.b16 %v418
    %v451 = vunpack.c.l.b16 %v419
    %v452 = vunpack.c.l.b16 %v420
    %v453 = vunpack.c.l.b16 %v421
    %v454 = vunpack.c.l.b16 %v422
    %v455 = vunpack.c.l.b16 %v423
    %v456 = vunpack.c.l.b16 %v424
    %v457 = vpack.c.b16 %v442, %v441
    %v458 = vpack.c.b16 %v444, %v443
    %v459 = vpack.c.b16 %v446, %v445
    %v460 = vpack.c.b16 %v448, %v447
    %v461 = vpack.c.b16 %v450, %v449
    %v462 = vpack.c.b16 %v452, %v451
    %v463 = vpack.c.b16 %v454, %v453
    %v464 = vpack.c.b16 %v456, %v455
    %473 = vmatprep.subr.bf16.mxu0 0
    %474 = vmatpush1.bf16.msra.mxu0 %v464
    %475 = vmatprep.subr.bf16.mxu0 0
    %476 = vmatpush1.bf16.msra.mxu0 %v463
    %477 = vmatprep.subr.bf16.mxu0 0
    %478 = vmatpush1.bf16.msra.mxu0 %v462
    %479 = vmatprep.subr.bf16.mxu0 0
    %480 = vmatpush1.bf16.msra.mxu0 %v461
    %481 = vmatprep.subr.bf16.mxu0 0
    %482 = vmatpush1.bf16.msra.mxu0 %v460
    %483 = vmatprep.subr.bf16.mxu0 0
    %484 = vmatpush1.bf16.msra.mxu0 %v459
    %485 = vmatprep.subr.bf16.mxu0 0
    %486 = vmatpush1.bf16.msra.mxu0 %v458
    %487 = vmatprep.subr.bf16.mxu0 0
    %488 = vmatpush1.bf16.msra.mxu0 %v457
    %489 = vmatprep.subr.bf16.mxu0 0
    %490 = vmatpush2.bf16.msra.mxu0 0
    %491 = vmatprep.subr.bf16.mxu0 0
    %492 = vmatpush2.bf16.msra.mxu0 0
    %493 = vmatprep.subr.bf16.mxu0 0
    %494 = vmatpush2.bf16.msra.mxu0 0
    %495 = vmatprep.subr.bf16.mxu0 0
    %496 = vmatpush2.bf16.msra.mxu0 0
    %497 = vmatprep.subr.bf16.mxu0 0
    %498 = vmatpush2.bf16.msra.mxu0 0
    %499 = vmatprep.subr.bf16.mxu0 0
    %500 = vmatpush2.bf16.msra.mxu0 0
    %501 = vmatprep.subr.bf16.mxu0 0
    %502 = vmatpush2.bf16.msra.mxu0 0
    %503 = vmatprep.subr.bf16.mxu0 0
    %504 = vmatpush2.bf16.msra.mxu0 0
    %505 = vmatprep.mubr.bf16.mxu0 0
    %506 = vmatmul.mubr.bf16.gmra.mxu0 %v276
    %v507 = vpop.f32.mrf.mxu0
    %v508 = vadd.f32 0.0, %v507
    %v509 = vpop.f32.mrf.mxu0
    %v510 = vpop.f32.mrf.mxu0
    %v511 = vadd.f32 0.0, %v510
    %v512 = vpop.f32.mrf.mxu0
    %513 = vmatprep.mubr.bf16.mxu0 0
    %514 = vmatmul.mubr.bf16.gmra.mxu0 %v277
    %v515 = vpop.f32.mrf.mxu0
    %v516 = vadd.f32 0.0, %v515
    %v517 = vpop.f32.mrf.mxu0
    %v518 = vpop.f32.mrf.mxu0
    %v519 = vadd.f32 0.0, %v518
    %v520 = vpop.f32.mrf.mxu0
    %521 = vmatprep.mubr.bf16.mxu0 0
    %522 = vmatmul.mubr.bf16.gmra.mxu0 %v278
    %v523 = vpop.f32.mrf.mxu0
    %v524 = vadd.f32 0.0, %v523
    %v525 = vpop.f32.mrf.mxu0
    %v526 = vpop.f32.mrf.mxu0
    %v527 = vadd.f32 0.0, %v526
    %v528 = vpop.f32.mrf.mxu0
    %529 = vmatprep.mubr.bf16.mxu0 0
    %530 = vmatmul.mubr.bf16.gmra.mxu0 %v279
    %v531 = vpop.f32.mrf.mxu0
    %v532 = vadd.f32 0.0, %v531
    %v533 = vpop.f32.mrf.mxu0
    %v534 = vpop.f32.mrf.mxu0
    %v535 = vadd.f32 0.0, %v534
    %v536 = vpop.f32.mrf.mxu0
    %537 = vmatprep.mubr.bf16.mxu0 0
    %538 = vmatmul.mubr.bf16.gmra.mxu0 %v280
    %v539 = vpop.f32.mrf.mxu0
    %v540 = vadd.f32 0.0, %v539
    %v541 = vpop.f32.mrf.mxu0
    %v542 = vpop.f32.mrf.mxu0
    %v543 = vadd.f32 0.0, %v542
    %v544 = vpop.f32.mrf.mxu0
    %545 = vmatprep.mubr.bf16.mxu0 0
    %546 = vmatmul.mubr.bf16.gmra.mxu0 %v281
    %v547 = vpop.f32.mrf.mxu0
    %v548 = vadd.f32 0.0, %v547
    %v549 = vpop.f32.mrf.mxu0
    %v550 = vpop.f32.mrf.mxu0
    %v551 = vadd.f32 0.0, %v550
    %v552 = vpop.f32.mrf.mxu0
    %553 = vmatprep.mubr.bf16.mxu0 0
    %554 = vmatmul.mubr.bf16.gmra.mxu0 %v282
    %v555 = vpop.f32.mrf.mxu0
    %v556 = vadd.f32 0.0, %v555
    %v557 = vpop.f32.mrf.mxu0
    %v558 = vpop.f32.mrf.mxu0
    %v559 = vadd.f32 0.0, %v558
    %v560 = vpop.f32.mrf.mxu0
    %561 = vmatprep.mubr.bf16.mxu0 0
    %562 = vmatmul.mubr.bf16.gmra.mxu0 %v283
    %v563 = vpop.f32.mrf.mxu0
    %v564 = vadd.f32 0.0, %v563
    %v565 = vpop.f32.mrf.mxu0
    %v566 = vpop.f32.mrf.mxu0
    %v567 = vadd.f32 0.0, %v566
    %v568 = vpop.f32.mrf.mxu0
    %569 = vdwg.mxu0
    %v586 = vunpack.c.l.b16 %v392
    %v587 = vunpack.c.l.b16 %v393
    %v588 = vunpack.c.l.b16 %v394
    %v589 = vunpack.c.l.b16 %v395
    %v590 = vunpack.c.l.b16 %v396
    %v591 = vunpack.c.l.b16 %v397
    %v592 = vunpack.c.l.b16 %v398
    %v593 = vunpack.c.l.b16 %v399
    %v594 = vunpack.c.l.b16 %v400
    %v595 = vunpack.c.l.b16 %v401
    %v596 = vunpack.c.l.b16 %v402
    %v597 = vunpack.c.l.b16 %v403
    %v598 = vunpack.c.l.b16 %v404
    %v599 = vunpack.c.l.b16 %v405
    %v600 = vunpack.c.l.b16 %v406
    %v601 = vunpack.c.l.b16 %v407
    %v602 = vpack.c.b16 %v587, %v586
    %v603 = vpack.c.b16 %v589, %v588
    %v604 = vpack.c.b16 %v591, %v590
    %v605 = vpack.c.b16 %v593, %v592
    %v606 = vpack.c.b16 %v595, %v594
    %v607 = vpack.c.b16 %v597, %v596
    %v608 = vpack.c.b16 %v599, %v598
    %v609 = vpack.c.b16 %v601, %v600
    %618 = vmatprep.subr.bf16.mxu0 0
    %619 = vmatpush1.bf16.msra.mxu0 %v609
    %620 = vmatprep.subr.bf16.mxu0 0
    %621 = vmatpush1.bf16.msra.mxu0 %v608
    %622 = vmatprep.subr.bf16.mxu0 0
    %623 = vmatpush1.bf16.msra.mxu0 %v607
    %624 = vmatprep.subr.bf16.mxu0 0
    %625 = vmatpush1.bf16.msra.mxu0 %v606
    %626 = vmatprep.subr.bf16.mxu0 0
    %627 = vmatpush1.bf16.msra.mxu0 %v605
    %628 = vmatprep.subr.bf16.mxu0 0
    %629 = vmatpush1.bf16.msra.mxu0 %v604
    %630 = vmatprep.subr.bf16.mxu0 0
    %631 = vmatpush1.bf16.msra.mxu0 %v603
    %632 = vmatprep.subr.bf16.mxu0 0
    %633 = vmatpush1.bf16.msra.mxu0 %v602
    %634 = vmatprep.subr.bf16.mxu0 0
    %635 = vmatpush2.bf16.msra.mxu0 0
    %636 = vmatprep.subr.bf16.mxu0 0
    %637 = vmatpush2.bf16.msra.mxu0 0
    %638 = vmatprep.subr.bf16.mxu0 0
    %639 = vmatpush2.bf16.msra.mxu0 0
    %640 = vmatprep.subr.bf16.mxu0 0
    %641 = vmatpush2.bf16.msra.mxu0 0
    %642 = vmatprep.subr.bf16.mxu0 0
    %643 = vmatpush2.bf16.msra.mxu0 0
    %644 = vmatprep.subr.bf16.mxu0 0
    %645 = vmatpush2.bf16.msra.mxu0 0
    %646 = vmatprep.subr.bf16.mxu0 0
    %647 = vmatpush2.bf16.msra.mxu0 0
    %648 = vmatprep.subr.bf16.mxu0 0
    %649 = vmatpush2.bf16.msra.mxu0 0
    %650 = vmatprep.mubr.bf16.mxu0 0
    %651 = vmatmul.mubr.bf16.gmra.mxu0 %v384
    %v652 = vpop.f32.mrf.mxu0
    %v653 = vadd.f32 %v508, %v652
    %v654 = vpop.f32.mrf.mxu0
    %v655 = vpop.f32.mrf.mxu0
    %v656 = vadd.f32 %v511, %v655
    %v657 = vpop.f32.mrf.mxu0
    %658 = vmatprep.mubr.bf16.mxu0 0
    %659 = vmatmul.mubr.bf16.gmra.mxu0 %v385
    %v660 = vpop.f32.mrf.mxu0
    %v661 = vadd.f32 %v516, %v660
    %v662 = vpop.f32.mrf.mxu0
    %v663 = vpop.f32.mrf.mxu0
    %v664 = vadd.f32 %v519, %v663
    %v665 = vpop.f32.mrf.mxu0
    %666 = vmatprep.mubr.bf16.mxu0 0
    %667 = vmatmul.mubr.bf16.gmra.mxu0 %v386
    %v668 = vpop.f32.mrf.mxu0
    %v669 = vadd.f32 %v524, %v668
    %v670 = vpop.f32.mrf.mxu0
    %v671 = vpop.f32.mrf.mxu0
    %v672 = vadd.f32 %v527, %v671
    %v673 = vpop.f32.mrf.mxu0
    %674 = vmatprep.mubr.bf16.mxu0 0
    %675 = vmatmul.mubr.bf16.gmra.mxu0 %v387
    %v676 = vpop.f32.mrf.mxu0
    %v677 = vadd.f32 %v532, %v676
    %v678 = vpop.f32.mrf.mxu0
    %v679 = vpop.f32.mrf.mxu0
    %v680 = vadd.f32 %v535, %v679
    %v681 = vpop.f32.mrf.mxu0
    %682 = vmatprep.mubr.bf16.mxu0 0
    %683 = vmatmul.mubr.bf16.gmra.mxu0 %v388
    %v684 = vpop.f32.mrf.mxu0
    %v685 = vadd.f32 %v540, %v684
    %v686 = vpop.f32.mrf.mxu0
    %v687 = vpop.f32.mrf.mxu0
    %v688 = vadd.f32 %v543, %v687
    %v689 = vpop.f32.mrf.mxu0
    %690 = vmatprep.mubr.bf16.mxu0 0
    %691 = vmatmul.mubr.bf16.gmra.mxu0 %v389
    %v692 = vpop.f32.mrf.mxu0
    %v693 = vadd.f32 %v548, %v692
    %v694 = vpop.f32.mrf.mxu0
    %v695 = vpop.f32.mrf.mxu0
    %v696 = vadd.f32 %v551, %v695
    %v697 = vpop.f32.mrf.mxu0
    %698 = vmatprep.mubr.bf16.mxu0 0
    %699 = vmatmul.mubr.bf16.gmra.mxu0 %v390
    %v700 = vpop.f32.mrf.mxu0
    %v701 = vadd.f32 %v556, %v700
    %v702 = vpop.f32.mrf.mxu0
    %v703 = vpop.f32.mrf.mxu0
    %v704 = vadd.f32 %v559, %v703
    %v705 = vpop.f32.mrf.mxu0
    %706 = vmatprep.mubr.bf16.mxu0 0
    %707 = vmatmul.mubr.bf16.gmra.mxu0 %v391
    %v708 = vpop.f32.mrf.mxu0
    %v709 = vadd.f32 %v564, %v708
    %v710 = vpop.f32.mrf.mxu0
    %v711 = vpop.f32.mrf.mxu0
    %v712 = vadd.f32 %v567, %v711
    %v713 = vpop.f32.mrf.mxu0
    %714 = vdwg.mxu0
    %v715 = vlaneseq
    %v716 = vshrl.u32 %v715, 7
    %v717 = vsub.s32 0, %v716
    %v718 = vrot.slane %v284, %v717
    %v719 = vadd.f32 %v653, %v718
    %v720 = vadd.f32 %v656, %v718
    %v721 = vadd.f32 %v661, %v718
    %v722 = vadd.f32 %v664, %v718
    %v723 = vadd.f32 %v669, %v718
    %v724 = vadd.f32 %v672, %v718
    %v725 = vadd.f32 %v677, %v718
    %v726 = vadd.f32 %v680, %v718
    %v727 = vadd.f32 %v685, %v718
    %v728 = vadd.f32 %v688, %v718
    %v729 = vadd.f32 %v693, %v718
    %v730 = vadd.f32 %v696, %v718
    %v731 = vadd.f32 %v701, %v718
    %v732 = vadd.f32 %v704, %v718
    %v733 = vadd.f32 %v709, %v718
    %v734 = vadd.f32 %v712, %v718
    %v735 = vmax.f32 %v719, 0.0
    %v736 = vmax.f32 %v720, 0.0
    %v737 = vmax.f32 %v721, 0.0
    %v738 = vmax.f32 %v722, 0.0
    %v739 = vmax.f32 %v723, 0.0
    %v740 = vmax.f32 %v724, 0.0
    %v741 = vmax.f32 %v725, 0.0
    %v742 = vmax.f32 %v726, 0.0
    %v743 = vmax.f32 %v727, 0.0
    %v744 = vmax.f32 %v728, 0.0
    %v745 = vmax.f32 %v729, 0.0
    %v746 = vmax.f32 %v730, 0.0
    %v747 = vmax.f32 %v731, 0.0
    %v748 = vmax.f32 %v732, 0.0
    %v749 = vmax.f32 %v733, 0.0
    %v750 = vmax.f32 %v734, 0.0
    %v751 = vsel %vm140, 1, 0
    %v752 = vsel %vm141, 1, 0
    %v753 = vsel %vm142, 1, 0
    %v754 = vsel %vm143, 1, 0
    %v755 = vsel %vm144, 1, 0
    %v756 = vsel %vm145, 1, 0
    %v757 = vsel %vm146, 1, 0
    %v758 = vsel %vm147, 1, 0
    %v759 = vsel %vm148, 1, 0
    %v760 = vsel %vm149, 1, 0
    %v761 = vsel %vm150, 1, 0
    %v762 = vsel %vm151, 1, 0
    %v763 = vsel %vm152, 1, 0
    %v764 = vsel %vm153, 1, 0
    %v765 = vsel %vm154, 1, 0
    %v766 = vsel %vm155, 1, 0
    %vm767 = vcmp.eq.s32.totalorder %v751, 1
    %vm768 = vcmp.eq.s32.totalorder %v752, 1
    %vm769 = vcmp.eq.s32.totalorder %v753, 1
    %vm770 = vcmp.eq.s32.totalorder %v754, 1
    %vm771 = vcmp.eq.s32.totalorder %v755, 1
    %vm772 = vcmp.eq.s32.totalorder %v756, 1
    %vm773 = vcmp.eq.s32.totalorder %v757, 1
    %vm774 = vcmp.eq.s32.totalorder %v758, 1
    %vm775 = vcmp.eq.s32.totalorder %v759, 1
    %vm776 = vcmp.eq.s32.totalorder %v760, 1
    %vm777 = vcmp.eq.s32.totalorder %v761, 1
    %vm778 = vcmp.eq.s32.totalorder %v762, 1
    %vm779 = vcmp.eq.s32.totalorder %v763, 1
    %vm780 = vcmp.eq.s32.totalorder %v764, 1
    %vm781 = vcmp.eq.s32.totalorder %v765, 1
    %vm782 = vcmp.eq.s32.totalorder %v766, 1
    %v783 = vsel %vm767, %v735, 0.0
    %v784 = vsel %vm768, %v736, 0.0
    %v785 = vsel %vm769, %v737, 0.0
    %v786 = vsel %vm770, %v738, 0.0
    %v787 = vsel %vm771, %v739, 0.0
    %v788 = vsel %vm772, %v740, 0.0
    %v789 = vsel %vm773, %v741, 0.0
    %v790 = vsel %vm774, %v742, 0.0
    %v791 = vsel %vm775, %v743, 0.0
    %v792 = vsel %vm776, %v744, 0.0
    %v793 = vsel %vm777, %v745, 0.0
    %v794 = vsel %vm778, %v746, 0.0
    %v795 = vsel %vm779, %v747, 0.0
    %v796 = vsel %vm780, %v748, 0.0
    %v797 = vsel %vm781, %v749, 0.0
    %v798 = vsel %vm782, %v750, 0.0
    %v799 = vmul.f32 %v783, %v783
    %v800 = vmul.f32 %v784, %v784
    %v801 = vmul.f32 %v785, %v785
    %v802 = vmul.f32 %v786, %v786
    %v803 = vmul.f32 %v787, %v787
    %v804 = vmul.f32 %v788, %v788
    %v805 = vmul.f32 %v789, %v789
    %v806 = vmul.f32 %v790, %v790
    %v807 = vmul.f32 %v791, %v791
    %v808 = vmul.f32 %v792, %v792
    %v809 = vmul.f32 %v793, %v793
    %v810 = vmul.f32 %v794, %v794
    %v811 = vmul.f32 %v795, %v795
    %v812 = vmul.f32 %v796, %v796
    %v813 = vmul.f32 %v797, %v797
    %v814 = vmul.f32 %v798, %v798
    %v815 = vadd.f32 %v783, %v784
    %v816 = vadd.f32 %v815, %v785
    %v817 = vadd.f32 %v816, %v786
    %v818 = vadd.f32 %v817, %v787
    %v819 = vadd.f32 %v818, %v788
    %v820 = vadd.f32 %v819, %v789
    %v821 = vadd.f32 %v820, %v790
    %v822 = vadd.f32 %v821, %v791
    %v823 = vadd.f32 %v822, %v792
    %v824 = vadd.f32 %v823, %v793
    %v825 = vadd.f32 %v824, %v794
    %v826 = vadd.f32 %v825, %v795
    %v827 = vadd.f32 %v826, %v796
    %v828 = vadd.f32 %v827, %v797
    %v829 = vadd.f32 %v828, %v798
    %v830 = vrot.slane %v829, 4
    %v831 = vadd.f32 %v829, %v830
    %v832 = vrot.slane %v831, 2
    %v833 = vadd.f32 %v831, %v832
    %v834 = vrot.slane %v833, 1
    %v835 = vadd.f32 %v833, %v834
    %v836 = vadd.f32 %v799, %v800
    %v837 = vadd.f32 %v836, %v801
    %v838 = vadd.f32 %v837, %v802
    %v839 = vadd.f32 %v838, %v803
    %v840 = vadd.f32 %v839, %v804
    %v841 = vadd.f32 %v840, %v805
    %v842 = vadd.f32 %v841, %v806
    %v843 = vadd.f32 %v842, %v807
    %v844 = vadd.f32 %v843, %v808
    %v845 = vadd.f32 %v844, %v809
    %v846 = vadd.f32 %v845, %v810
    %v847 = vadd.f32 %v846, %v811
    %v848 = vadd.f32 %v847, %v812
    %v849 = vadd.f32 %v848, %v813
    %v850 = vadd.f32 %v849, %v814
    %v851 = vrot.slane %v850, 4
    %v852 = vadd.f32 %v850, %v851
    %v853 = vrot.slane %v852, 2
    %v854 = vadd.f32 %v852, %v853
    %v855 = vrot.slane %v854, 1
    %v856 = vadd.f32 %v854, %v855
    %v857 = vmul.f32 %v835, 0.03125
    %v858 = vmul.f32 %v856, 0.03125
    %v859 = vmul.f32 %v857, %v857
    %v860 = vsub.f32 %v858, %v859
    %v861 = vmax.f32 %v860, 0.0
    %v862 = vadd.f32 %v861, 1e-05
    %v863 = vrsqrt.pop %v862
    %v864 = vsub.f32 %v783, %v857
    %v865 = vsub.f32 %v784, %v857
    %v866 = vsub.f32 %v785, %v857
    %v867 = vsub.f32 %v786, %v857
    %v868 = vsub.f32 %v787, %v857
    %v869 = vsub.f32 %v788, %v857
    %v870 = vsub.f32 %v789, %v857
    %v871 = vsub.f32 %v790, %v857
    %v872 = vsub.f32 %v791, %v857
    %v873 = vsub.f32 %v792, %v857
    %v874 = vsub.f32 %v793, %v857
    %v875 = vsub.f32 %v794, %v857
    %v876 = vsub.f32 %v795, %v857
    %v877 = vsub.f32 %v796, %v857
    %v878 = vsub.f32 %v797, %v857
    %v879 = vsub.f32 %v798, %v857
    %v880 = vmul.f32 %v863, %v285
    %v881 = vlaneseq
    %v882 = vshrl.u32 %v881, 7
    %v883 = vsub.s32 0, %v882
    %v884 = vrot.slane %v880, %v883
    %v885 = vmul.f32 %v864, %v884
    %v886 = vmul.f32 %v865, %v884
    %v887 = vmul.f32 %v866, %v884
    %v888 = vmul.f32 %v867, %v884
    %v889 = vmul.f32 %v868, %v884
    %v890 = vmul.f32 %v869, %v884
    %v891 = vmul.f32 %v870, %v884
    %v892 = vmul.f32 %v871, %v884
    %v893 = vmul.f32 %v872, %v884
    %v894 = vmul.f32 %v873, %v884
    %v895 = vmul.f32 %v874, %v884
    %v896 = vmul.f32 %v875, %v884
    %v897 = vmul.f32 %v876, %v884
    %v898 = vmul.f32 %v877, %v884
    %v899 = vmul.f32 %v878, %v884
    %v900 = vmul.f32 %v879, %v884
    %v901 = vlaneseq
    %v902 = vshrl.u32 %v901, 7
    %v903 = vsub.s32 0, %v902
    %v904 = vrot.slane %v286, %v903
    %v905 = vadd.f32 %v885, %v904
    %v906 = vadd.f32 %v886, %v904
    %v907 = vadd.f32 %v887, %v904
    %v908 = vadd.f32 %v888, %v904
    %v909 = vadd.f32 %v889, %v904
    %v910 = vadd.f32 %v890, %v904
    %v911 = vadd.f32 %v891, %v904
    %v912 = vadd.f32 %v892, %v904
    %v913 = vadd.f32 %v893, %v904
    %v914 = vadd.f32 %v894, %v904
    %v915 = vadd.f32 %v895, %v904
    %v916 = vadd.f32 %v896, %v904
    %v917 = vadd.f32 %v897, %v904
    %v918 = vadd.f32 %v898, %v904
    %v919 = vadd.f32 %v899, %v904
    %v920 = vadd.f32 %v900, %v904
    %v921 = vpack.c.bf16 %v906, %v905
    %v922 = vpack.c.bf16 %v908, %v907
    %v923 = vpack.c.bf16 %v910, %v909
    %v924 = vpack.c.bf16 %v912, %v911
    %v925 = vpack.c.bf16 %v914, %v913
    %v926 = vpack.c.bf16 %v916, %v915
    %v927 = vpack.c.bf16 %v918, %v917
    %v928 = vpack.c.bf16 %v920, %v919
    %v929 = vld [vmem:[#allocation11] sm:$0xf]
    %v930 = vld [vmem:[#allocation11 + $0x4] sm:$0xf]
    %v931 = vld [vmem:[#allocation11 + $0x8] sm:$0xf]
    %v932 = vld [vmem:[#allocation11 + $0xc] sm:$0xf]
    %v933 = vld [vmem:[#allocation11 + $0x10] sm:$0xf]
    %v934 = vld [vmem:[#allocation11 + $0x14] sm:$0xf]
    %v935 = vld [vmem:[#allocation11 + $0x18] sm:$0xf]
    %v936 = vld [vmem:[#allocation11 + $0x1c] sm:$0xf]
    %v937 = vld [vmem:[#allocation11 + $0x20] sm:$0xf]
    %v938 = vld [vmem:[#allocation11 + $0x24] sm:$0xf]
    %v939 = vld [vmem:[#allocation11 + $0x28] sm:$0xf]
    %v940 = vld [vmem:[#allocation11 + $0x2c] sm:$0xf]
    %v941 = vld [vmem:[#allocation11 + $0x30] sm:$0xf]
    %v942 = vld [vmem:[#allocation11 + $0x34] sm:$0xf]
    %v943 = vld [vmem:[#allocation11 + $0x38] sm:$0xf]
    %v944 = vld [vmem:[#allocation11 + $0x3c] sm:$0xf]
    %v945 = vld [vmem:[#allocation13 + $0x3] sm:$0x1]
    %v946 = vld [vmem:[#allocation13 + $0x4] sm:$0x1]
    %v947 = vld [vmem:[#allocation13 + $0x5] sm:$0x1]
    %948 = vmatprep.subr.bf16.mxu0 0
    %949 = vmatpush1.bf16.msra.mxu0 %v928
    %950 = vmatprep.subr.bf16.mxu0 0
    %951 = vmatpush1.bf16.msra.mxu0 %v927
    %952 = vmatprep.subr.bf16.mxu0 0
    %953 = vmatpush1.bf16.msra.mxu0 %v926
    %954 = vmatprep.subr.bf16.mxu0 0
    %955 = vmatpush1.bf16.msra.mxu0 %v925
    %956 = vmatprep.subr.bf16.mxu0 0
    %957 = vmatpush1.bf16.msra.mxu0 %v924
    %958 = vmatprep.subr.bf16.mxu0 0
    %959 = vmatpush1.bf16.msra.mxu0 %v923
    %960 = vmatprep.subr.bf16.mxu0 0
    %961 = vmatpush1.bf16.msra.mxu0 %v922
    %962 = vmatprep.subr.bf16.mxu0 0
    %963 = vmatpush1.bf16.msra.mxu0 %v921
    %964 = vmatprep.subr.bf16.mxu0 0
    %965 = vmatpush2.bf16.msra.mxu0 0
    %966 = vmatprep.subr.bf16.mxu0 0
    %967 = vmatpush2.bf16.msra.mxu0 0
    %968 = vmatprep.subr.bf16.mxu0 0
    %969 = vmatpush2.bf16.msra.mxu0 0
    %970 = vmatprep.subr.bf16.mxu0 0
    %971 = vmatpush2.bf16.msra.mxu0 0
    %972 = vmatprep.subr.bf16.mxu0 0
    %973 = vmatpush2.bf16.msra.mxu0 0
    %974 = vmatprep.subr.bf16.mxu0 0
    %975 = vmatpush2.bf16.msra.mxu0 0
    %976 = vmatprep.subr.bf16.mxu0 0
    %977 = vmatpush2.bf16.msra.mxu0 0
    %978 = vmatprep.subr.bf16.mxu0 0
    %979 = vmatpush2.bf16.msra.mxu0 0
    %980 = vmatprep.mubr.bf16.mxu0 0
    %981 = vmatmul.mubr.bf16.gmra.mxu0 %v252
    %v982 = vpop.f32.mrf.mxu0
    %v983 = vadd.f32 0.0, %v982
    %v984 = vpop.f32.mrf.mxu0
    %v985 = vpop.f32.mrf.mxu0
    %v986 = vadd.f32 0.0, %v985
    %v987 = vpop.f32.mrf.mxu0
    %988 = vmatprep.mubr.bf16.mxu0 0
    %989 = vmatmul.mubr.bf16.gmra.mxu0 %v253
    %v990 = vpop.f32.mrf.mxu0
    %v991 = vadd.f32 0.0, %v990
    %v992 = vpop.f32.mrf.mxu0
    %v993 = vpop.f32.mrf.mxu0
    %v994 = vadd.f32 0.0, %v993
    %v995 = vpop.f32.mrf.mxu0
    %996 = vmatprep.mubr.bf16.mxu0 0
    %997 = vmatmul.mubr.bf16.gmra.mxu0 %v254
    %v998 = vpop.f32.mrf.mxu0
    %v999 = vadd.f32 0.0, %v998
    %v1000 = vpop.f32.mrf.mxu0
    %v1001 = vpop.f32.mrf.mxu0
    %v1002 = vadd.f32 0.0, %v1001
    %v1003 = vpop.f32.mrf.mxu0
    %1004 = vmatprep.mubr.bf16.mxu0 0
    %1005 = vmatmul.mubr.bf16.gmra.mxu0 %v255
    %v1006 = vpop.f32.mrf.mxu0
    %v1007 = vadd.f32 0.0, %v1006
    %v1008 = vpop.f32.mrf.mxu0
    %v1009 = vpop.f32.mrf.mxu0
    %v1010 = vadd.f32 0.0, %v1009
    %v1011 = vpop.f32.mrf.mxu0
    %1012 = vmatprep.mubr.bf16.mxu0 0
    %1013 = vmatmul.mubr.bf16.gmra.mxu0 %v256
    %v1014 = vpop.f32.mrf.mxu0
    %v1015 = vadd.f32 0.0, %v1014
    %v1016 = vpop.f32.mrf.mxu0
    %v1017 = vpop.f32.mrf.mxu0
    %v1018 = vadd.f32 0.0, %v1017
    %v1019 = vpop.f32.mrf.mxu0
    %1020 = vmatprep.mubr.bf16.mxu0 0
    %1021 = vmatmul.mubr.bf16.gmra.mxu0 %v257
    %v1022 = vpop.f32.mrf.mxu0
    %v1023 = vadd.f32 0.0, %v1022
    %v1024 = vpop.f32.mrf.mxu0
    %v1025 = vpop.f32.mrf.mxu0
    %v1026 = vadd.f32 0.0, %v1025
    %v1027 = vpop.f32.mrf.mxu0
    %1028 = vmatprep.mubr.bf16.mxu0 0
    %1029 = vmatmul.mubr.bf16.gmra.mxu0 %v258
    %v1030 = vpop.f32.mrf.mxu0
    %v1031 = vadd.f32 0.0, %v1030
    %v1032 = vpop.f32.mrf.mxu0
    %v1033 = vpop.f32.mrf.mxu0
    %v1034 = vadd.f32 0.0, %v1033
    %v1035 = vpop.f32.mrf.mxu0
    %1036 = vmatprep.mubr.bf16.mxu0 0
    %1037 = vmatmul.mubr.bf16.gmra.mxu0 %v259
    %v1038 = vpop.f32.mrf.mxu0
    %v1039 = vadd.f32 0.0, %v1038
    %v1040 = vpop.f32.mrf.mxu0
    %v1041 = vpop.f32.mrf.mxu0
    %v1042 = vadd.f32 0.0, %v1041
    %v1043 = vpop.f32.mrf.mxu0
    %1044 = vdwg.mxu0
    %v1045 = vpack.c.bf16 %v986, %v983
    %v1046 = vpack.c.bf16 %v994, %v991
    %v1047 = vpack.c.bf16 %v1002, %v999
    %v1048 = vpack.c.bf16 %v1010, %v1007
    %v1049 = vpack.c.bf16 %v1018, %v1015
    %v1050 = vpack.c.bf16 %v1026, %v1023
    %v1051 = vpack.c.bf16 %v1034, %v1031
    %v1052 = vpack.c.bf16 %v1042, %v1039
    %v1053 = vld [vmem:[#allocation8] sm:$0xf]
    %v1054 = vld [vmem:[#allocation8 + $0x4] sm:$0xf]
    %v1055 = vld [vmem:[#allocation8 + $0x8] sm:$0xf]
    %v1056 = vld [vmem:[#allocation8 + $0xc] sm:$0xf]
    %v1057 = vld [vmem:[#allocation8 + $0x10] sm:$0xf]
    %v1058 = vld [vmem:[#allocation8 + $0x14] sm:$0xf]
    %v1059 = vld [vmem:[#allocation8 + $0x18] sm:$0xf]
    %v1060 = vld [vmem:[#allocation8 + $0x1c] sm:$0xf]
    %v1061 = vld [vmem:[#allocation8 + $0x20] sm:$0xf]
    %v1062 = vld [vmem:[#allocation8 + $0x24] sm:$0xf]
    %v1063 = vld [vmem:[#allocation8 + $0x28] sm:$0xf]
    %v1064 = vld [vmem:[#allocation8 + $0x2c] sm:$0xf]
    %v1065 = vld [vmem:[#allocation8 + $0x30] sm:$0xf]
    %v1066 = vld [vmem:[#allocation8 + $0x34] sm:$0xf]
    %v1067 = vld [vmem:[#allocation8 + $0x38] sm:$0xf]
    %v1068 = vld [vmem:[#allocation8 + $0x3c] sm:$0xf]
    %s1069 = scalar_lea.vmem [#allocation8], 64
    %v1070 = vld [vmem:[%s1069] sm:$0xf]
    %v1071 = vld [vmem:[%s1069 + $0x4] sm:$0xf]
    %v1072 = vld [vmem:[%s1069 + $0x8] sm:$0xf]
    %v1073 = vld [vmem:[%s1069 + $0xc] sm:$0xf]
    %v1074 = vld [vmem:[%s1069 + $0x10] sm:$0xf]
    %v1075 = vld [vmem:[%s1069 + $0x14] sm:$0xf]
    %v1076 = vld [vmem:[%s1069 + $0x18] sm:$0xf]
    %v1077 = vld [vmem:[%s1069 + $0x1c] sm:$0xf]
    %v1078 = vld [vmem:[%s1069 + $0x20] sm:$0xf]
    %v1079 = vld [vmem:[%s1069 + $0x24] sm:$0xf]
    %v1080 = vld [vmem:[%s1069 + $0x28] sm:$0xf]
    %v1081 = vld [vmem:[%s1069 + $0x2c] sm:$0xf]
    %v1082 = vld [vmem:[%s1069 + $0x30] sm:$0xf]
    %v1083 = vld [vmem:[%s1069 + $0x34] sm:$0xf]
    %v1084 = vld [vmem:[%s1069 + $0x38] sm:$0xf]
    %v1085 = vld [vmem:[%s1069 + $0x3c] sm:$0xf]
    %v1102 = vunpack.c.l.b16 %v1070
    %v1103 = vunpack.c.l.b16 %v1071
    %v1104 = vunpack.c.l.b16 %v1072
    %v1105 = vunpack.c.l.b16 %v1073
    %v1106 = vunpack.c.l.b16 %v1074
    %v1107 = vunpack.c.l.b16 %v1075
    %v1108 = vunpack.c.l.b16 %v1076
    %v1109 = vunpack.c.l.b16 %v1077
    %v1110 = vunpack.c.l.b16 %v1078
    %v1111 = vunpack.c.l.b16 %v1079
    %v1112 = vunpack.c.l.b16 %v1080
    %v1113 = vunpack.c.l.b16 %v1081
    %v1114 = vunpack.c.l.b16 %v1082
    %v1115 = vunpack.c.l.b16 %v1083
    %v1116 = vunpack.c.l.b16 %v1084
    %v1117 = vunpack.c.l.b16 %v1085
    %v1118 = vpack.c.b16 %v1103, %v1102
    %v1119 = vpack.c.b16 %v1105, %v1104
    %v1120 = vpack.c.b16 %v1107, %v1106
    %v1121 = vpack.c.b16 %v1109, %v1108
    %v1122 = vpack.c.b16 %v1111, %v1110
    %v1123 = vpack.c.b16 %v1113, %v1112
    %v1124 = vpack.c.b16 %v1115, %v1114
    %v1125 = vpack.c.b16 %v1117, %v1116
    %1134 = vmatprep.subr.bf16.mxu0 0
    %1135 = vmatpush1.bf16.msra.mxu0 %v1125
    %1136 = vmatprep.subr.bf16.mxu0 0
    %1137 = vmatpush1.bf16.msra.mxu0 %v1124
    %1138 = vmatprep.subr.bf16.mxu0 0
    %1139 = vmatpush1.bf16.msra.mxu0 %v1123
    %1140 = vmatprep.subr.bf16.mxu0 0
    %1141 = vmatpush1.bf16.msra.mxu0 %v1122
    %1142 = vmatprep.subr.bf16.mxu0 0
    %1143 = vmatpush1.bf16.msra.mxu0 %v1121
    %1144 = vmatprep.subr.bf16.mxu0 0
    %1145 = vmatpush1.bf16.msra.mxu0 %v1120
    %1146 = vmatprep.subr.bf16.mxu0 0
    %1147 = vmatpush1.bf16.msra.mxu0 %v1119
    %1148 = vmatprep.subr.bf16.mxu0 0
    %1149 = vmatpush1.bf16.msra.mxu0 %v1118
    %1150 = vmatprep.subr.bf16.mxu0 0
    %1151 = vmatpush2.bf16.msra.mxu0 0
    %1152 = vmatprep.subr.bf16.mxu0 0
    %1153 = vmatpush2.bf16.msra.mxu0 0
    %1154 = vmatprep.subr.bf16.mxu0 0
    %1155 = vmatpush2.bf16.msra.mxu0 0
    %1156 = vmatprep.subr.bf16.mxu0 0
    %1157 = vmatpush2.bf16.msra.mxu0 0
    %1158 = vmatprep.subr.bf16.mxu0 0
    %1159 = vmatpush2.bf16.msra.mxu0 0
    %1160 = vmatprep.subr.bf16.mxu0 0
    %1161 = vmatpush2.bf16.msra.mxu0 0
    %1162 = vmatprep.subr.bf16.mxu0 0
    %1163 = vmatpush2.bf16.msra.mxu0 0
    %1164 = vmatprep.subr.bf16.mxu0 0
    %1165 = vmatpush2.bf16.msra.mxu0 0
    %1166 = vmatprep.mubr.bf16.mxu0 0
    %1167 = vmatmul.mubr.bf16.gmra.mxu0 %v921
    %v1168 = vpop.f32.mrf.mxu0
    %v1169 = vadd.f32 0.0, %v1168
    %v1170 = vpop.f32.mrf.mxu0
    %v1171 = vpop.f32.mrf.mxu0
    %v1172 = vadd.f32 0.0, %v1171
    %v1173 = vpop.f32.mrf.mxu0
    %1174 = vmatprep.mubr.bf16.mxu0 0
    %1175 = vmatmul.mubr.bf16.gmra.mxu0 %v922
    %v1176 = vpop.f32.mrf.mxu0
    %v1177 = vadd.f32 0.0, %v1176
    %v1178 = vpop.f32.mrf.mxu0
    %v1179 = vpop.f32.mrf.mxu0
    %v1180 = vadd.f32 0.0, %v1179
    %v1181 = vpop.f32.mrf.mxu0
    %1182 = vmatprep.mubr.bf16.mxu0 0
    %1183 = vmatmul.mubr.bf16.gmra.mxu0 %v923
    %v1184 = vpop.f32.mrf.mxu0
    %v1185 = vadd.f32 0.0, %v1184
    %v1186 = vpop.f32.mrf.mxu0
    %v1187 = vpop.f32.mrf.mxu0
    %v1188 = vadd.f32 0.0, %v1187
    %v1189 = vpop.f32.mrf.mxu0
    %1190 = vmatprep.mubr.bf16.mxu0 0
    %1191 = vmatmul.mubr.bf16.gmra.mxu0 %v924
    %v1192 = vpop.f32.mrf.mxu0
    %v1193 = vadd.f32 0.0, %v1192
    %v1194 = vpop.f32.mrf.mxu0
    %v1195 = vpop.f32.mrf.mxu0
    %v1196 = vadd.f32 0.0, %v1195
    %v1197 = vpop.f32.mrf.mxu0
    %1198 = vmatprep.mubr.bf16.mxu0 0
    %1199 = vmatmul.mubr.bf16.gmra.mxu0 %v925
    %v1200 = vpop.f32.mrf.mxu0
    %v1201 = vadd.f32 0.0, %v1200
    %v1202 = vpop.f32.mrf.mxu0
    %v1203 = vpop.f32.mrf.mxu0
    %v1204 = vadd.f32 0.0, %v1203
    %v1205 = vpop.f32.mrf.mxu0
    %1206 = vmatprep.mubr.bf16.mxu0 0
    %1207 = vmatmul.mubr.bf16.gmra.mxu0 %v926
    %v1208 = vpop.f32.mrf.mxu0
    %v1209 = vadd.f32 0.0, %v1208
    %v1210 = vpop.f32.mrf.mxu0
    %v1211 = vpop.f32.mrf.mxu0
    %v1212 = vadd.f32 0.0, %v1211
    %v1213 = vpop.f32.mrf.mxu0
    %1214 = vmatprep.mubr.bf16.mxu0 0
    %1215 = vmatmul.mubr.bf16.gmra.mxu0 %v927
    %v1216 = vpop.f32.mrf.mxu0
    %v1217 = vadd.f32 0.0, %v1216
    %v1218 = vpop.f32.mrf.mxu0
    %v1219 = vpop.f32.mrf.mxu0
    %v1220 = vadd.f32 0.0, %v1219
    %v1221 = vpop.f32.mrf.mxu0
    %1222 = vmatprep.mubr.bf16.mxu0 0
    %1223 = vmatmul.mubr.bf16.gmra.mxu0 %v928
    %v1224 = vpop.f32.mrf.mxu0
    %v1225 = vadd.f32 0.0, %v1224
    %v1226 = vpop.f32.mrf.mxu0
    %v1227 = vpop.f32.mrf.mxu0
    %v1228 = vadd.f32 0.0, %v1227
    %v1229 = vpop.f32.mrf.mxu0
    %1230 = vdwg.mxu0
    %v1247 = vunpack.c.l.b16 %v1053
    %v1248 = vunpack.c.l.b16 %v1054
    %v1249 = vunpack.c.l.b16 %v1055
    %v1250 = vunpack.c.l.b16 %v1056
    %v1251 = vunpack.c.l.b16 %v1057
    %v1252 = vunpack.c.l.b16 %v1058
    %v1253 = vunpack.c.l.b16 %v1059
    %v1254 = vunpack.c.l.b16 %v1060
    %v1255 = vunpack.c.l.b16 %v1061
    %v1256 = vunpack.c.l.b16 %v1062
    %v1257 = vunpack.c.l.b16 %v1063
    %v1258 = vunpack.c.l.b16 %v1064
    %v1259 = vunpack.c.l.b16 %v1065
    %v1260 = vunpack.c.l.b16 %v1066
    %v1261 = vunpack.c.l.b16 %v1067
    %v1262 = vunpack.c.l.b16 %v1068
    %v1263 = vpack.c.b16 %v1248, %v1247
    %v1264 = vpack.c.b16 %v1250, %v1249
    %v1265 = vpack.c.b16 %v1252, %v1251
    %v1266 = vpack.c.b16 %v1254, %v1253
    %v1267 = vpack.c.b16 %v1256, %v1255
    %v1268 = vpack.c.b16 %v1258, %v1257
    %v1269 = vpack.c.b16 %v1260, %v1259
    %v1270 = vpack.c.b16 %v1262, %v1261
    %1279 = vmatprep.subr.bf16.mxu0 0
    %1280 = vmatpush1.bf16.msra.mxu0 %v1270
    %1281 = vmatprep.subr.bf16.mxu0 0
    %1282 = vmatpush1.bf16.msra.mxu0 %v1269
    %1283 = vmatprep.subr.bf16.mxu0 0
    %1284 = vmatpush1.bf16.msra.mxu0 %v1268
    %1285 = vmatprep.subr.bf16.mxu0 0
    %1286 = vmatpush1.bf16.msra.mxu0 %v1267
    %1287 = vmatprep.subr.bf16.mxu0 0
    %1288 = vmatpush1.bf16.msra.mxu0 %v1266
    %1289 = vmatprep.subr.bf16.mxu0 0
    %1290 = vmatpush1.bf16.msra.mxu0 %v1265
    %1291 = vmatprep.subr.bf16.mxu0 0
    %1292 = vmatpush1.bf16.msra.mxu0 %v1264
    %1293 = vmatprep.subr.bf16.mxu0 0
    %1294 = vmatpush1.bf16.msra.mxu0 %v1263
    %1295 = vmatprep.subr.bf16.mxu0 0
    %1296 = vmatpush2.bf16.msra.mxu0 0
    %1297 = vmatprep.subr.bf16.mxu0 0
    %1298 = vmatpush2.bf16.msra.mxu0 0
    %1299 = vmatprep.subr.bf16.mxu0 0
    %1300 = vmatpush2.bf16.msra.mxu0 0
    %1301 = vmatprep.subr.bf16.mxu0 0
    %1302 = vmatpush2.bf16.msra.mxu0 0
    %1303 = vmatprep.subr.bf16.mxu0 0
    %1304 = vmatpush2.bf16.msra.mxu0 0
    %1305 = vmatprep.subr.bf16.mxu0 0
    %1306 = vmatpush2.bf16.msra.mxu0 0
    %1307 = vmatprep.subr.bf16.mxu0 0
    %1308 = vmatpush2.bf16.msra.mxu0 0
    %1309 = vmatprep.subr.bf16.mxu0 0
    %1310 = vmatpush2.bf16.msra.mxu0 0
    %1311 = vmatprep.mubr.bf16.mxu0 0
    %1312 = vmatmul.mubr.bf16.gmra.mxu0 %v1045
    %v1313 = vpop.f32.mrf.mxu0
    %v1314 = vadd.f32 %v1169, %v1313
    %v1315 = vpop.f32.mrf.mxu0
    %v1316 = vpop.f32.mrf.mxu0
    %v1317 = vadd.f32 %v1172, %v1316
    %v1318 = vpop.f32.mrf.mxu0
    %1319 = vmatprep.mubr.bf16.mxu0 0
    %1320 = vmatmul.mubr.bf16.gmra.mxu0 %v1046
    %v1321 = vpop.f32.mrf.mxu0
    %v1322 = vadd.f32 %v1177, %v1321
    %v1323 = vpop.f32.mrf.mxu0
    %v1324 = vpop.f32.mrf.mxu0
    %v1325 = vadd.f32 %v1180, %v1324
    %v1326 = vpop.f32.mrf.mxu0
    %1327 = vmatprep.mubr.bf16.mxu0 0
    %1328 = vmatmul.mubr.bf16.gmra.mxu0 %v1047
    %v1329 = vpop.f32.mrf.mxu0
    %v1330 = vadd.f32 %v1185, %v1329
    %v1331 = vpop.f32.mrf.mxu0
    %v1332 = vpop.f32.mrf.mxu0
    %v1333 = vadd.f32 %v1188, %v1332
    %v1334 = vpop.f32.mrf.mxu0
    %1335 = vmatprep.mubr.bf16.mxu0 0
    %1336 = vmatmul.mubr.bf16.gmra.mxu0 %v1048
    %v1337 = vpop.f32.mrf.mxu0
    %v1338 = vadd.f32 %v1193, %v1337
    %v1339 = vpop.f32.mrf.mxu0
    %v1340 = vpop.f32.mrf.mxu0
    %v1341 = vadd.f32 %v1196, %v1340
    %v1342 = vpop.f32.mrf.mxu0
    %1343 = vmatprep.mubr.bf16.mxu0 0
    %1344 = vmatmul.mubr.bf16.gmra.mxu0 %v1049
    %v1345 = vpop.f32.mrf.mxu0
    %v1346 = vadd.f32 %v1201, %v1345
    %v1347 = vpop.f32.mrf.mxu0
    %v1348 = vpop.f32.mrf.mxu0
    %v1349 = vadd.f32 %v1204, %v1348
    %v1350 = vpop.f32.mrf.mxu0
    %1351 = vmatprep.mubr.bf16.mxu0 0
    %1352 = vmatmul.mubr.bf16.gmra.mxu0 %v1050
    %v1353 = vpop.f32.mrf.mxu0
    %v1354 = vadd.f32 %v1209, %v1353
    %v1355 = vpop.f32.mrf.mxu0
    %v1356 = vpop.f32.mrf.mxu0
    %v1357 = vadd.f32 %v1212, %v1356
    %v1358 = vpop.f32.mrf.mxu0
    %1359 = vmatprep.mubr.bf16.mxu0 0
    %1360 = vmatmul.mubr.bf16.gmra.mxu0 %v1051
    %v1361 = vpop.f32.mrf.mxu0
    %v1362 = vadd.f32 %v1217, %v1361
    %v1363 = vpop.f32.mrf.mxu0
    %v1364 = vpop.f32.mrf.mxu0
    %v1365 = vadd.f32 %v1220, %v1364
    %v1366 = vpop.f32.mrf.mxu0
    %1367 = vmatprep.mubr.bf16.mxu0 0
    %1368 = vmatmul.mubr.bf16.gmra.mxu0 %v1052
    %v1369 = vpop.f32.mrf.mxu0
    %v1370 = vadd.f32 %v1225, %v1369
    %v1371 = vpop.f32.mrf.mxu0
    %v1372 = vpop.f32.mrf.mxu0
    %v1373 = vadd.f32 %v1228, %v1372
    %v1374 = vpop.f32.mrf.mxu0
    %1375 = vdwg.mxu0
    %v1376 = vlaneseq
    %v1377 = vshrl.u32 %v1376, 7
    %v1378 = vsub.s32 0, %v1377
    %v1379 = vrot.slane %v945, %v1378
    %v1380 = vadd.f32 %v1314, %v1379
    %v1381 = vadd.f32 %v1317, %v1379
    %v1382 = vadd.f32 %v1322, %v1379
    %v1383 = vadd.f32 %v1325, %v1379
    %v1384 = vadd.f32 %v1330, %v1379
    %v1385 = vadd.f32 %v1333, %v1379
    %v1386 = vadd.f32 %v1338, %v1379
    %v1387 = vadd.f32 %v1341, %v1379
    %v1388 = vadd.f32 %v1346, %v1379
    %v1389 = vadd.f32 %v1349, %v1379
    %v1390 = vadd.f32 %v1354, %v1379
    %v1391 = vadd.f32 %v1357, %v1379
    %v1392 = vadd.f32 %v1362, %v1379
    %v1393 = vadd.f32 %v1365, %v1379
    %v1394 = vadd.f32 %v1370, %v1379
    %v1395 = vadd.f32 %v1373, %v1379
    %v1396 = vmax.f32 %v1380, 0.0
    %v1397 = vmax.f32 %v1381, 0.0
    %v1398 = vmax.f32 %v1382, 0.0
    %v1399 = vmax.f32 %v1383, 0.0
    %v1400 = vmax.f32 %v1384, 0.0
    %v1401 = vmax.f32 %v1385, 0.0
    %v1402 = vmax.f32 %v1386, 0.0
    %v1403 = vmax.f32 %v1387, 0.0
    %v1404 = vmax.f32 %v1388, 0.0
    %v1405 = vmax.f32 %v1389, 0.0
    %v1406 = vmax.f32 %v1390, 0.0
    %v1407 = vmax.f32 %v1391, 0.0
    %v1408 = vmax.f32 %v1392, 0.0
    %v1409 = vmax.f32 %v1393, 0.0
    %v1410 = vmax.f32 %v1394, 0.0
    %v1411 = vmax.f32 %v1395, 0.0
    %v1412 = vsel %vm767, %v1396, 0.0
    %v1413 = vsel %vm768, %v1397, 0.0
    %v1414 = vsel %vm769, %v1398, 0.0
    %v1415 = vsel %vm770, %v1399, 0.0
    %v1416 = vsel %vm771, %v1400, 0.0
    %v1417 = vsel %vm772, %v1401, 0.0
    %v1418 = vsel %vm773, %v1402, 0.0
    %v1419 = vsel %vm774, %v1403, 0.0
    %v1420 = vsel %vm775, %v1404, 0.0
    %v1421 = vsel %vm776, %v1405, 0.0
    %v1422 = vsel %vm777, %v1406, 0.0
    %v1423 = vsel %vm778, %v1407, 0.0
    %v1424 = vsel %vm779, %v1408, 0.0
    %v1425 = vsel %vm780, %v1409, 0.0
    %v1426 = vsel %vm781, %v1410, 0.0
    %v1427 = vsel %vm782, %v1411, 0.0
    %v1428 = vmul.f32 %v1412, %v1412
    %v1429 = vmul.f32 %v1413, %v1413
    %v1430 = vmul.f32 %v1414, %v1414
    %v1431 = vmul.f32 %v1415, %v1415
    %v1432 = vmul.f32 %v1416, %v1416
    %v1433 = vmul.f32 %v1417, %v1417
    %v1434 = vmul.f32 %v1418, %v1418
    %v1435 = vmul.f32 %v1419, %v1419
    %v1436 = vmul.f32 %v1420, %v1420
    %v1437 = vmul.f32 %v1421, %v1421
    %v1438 = vmul.f32 %v1422, %v1422
    %v1439 = vmul.f32 %v1423, %v1423
    %v1440 = vmul.f32 %v1424, %v1424
    %v1441 = vmul.f32 %v1425, %v1425
    %v1442 = vmul.f32 %v1426, %v1426
    %v1443 = vmul.f32 %v1427, %v1427
    %v1444 = vadd.f32 %v1412, %v1413
    %v1445 = vadd.f32 %v1444, %v1414
    %v1446 = vadd.f32 %v1445, %v1415
    %v1447 = vadd.f32 %v1446, %v1416
    %v1448 = vadd.f32 %v1447, %v1417
    %v1449 = vadd.f32 %v1448, %v1418
    %v1450 = vadd.f32 %v1449, %v1419
    %v1451 = vadd.f32 %v1450, %v1420
    %v1452 = vadd.f32 %v1451, %v1421
    %v1453 = vadd.f32 %v1452, %v1422
    %v1454 = vadd.f32 %v1453, %v1423
    %v1455 = vadd.f32 %v1454, %v1424
    %v1456 = vadd.f32 %v1455, %v1425
    %v1457 = vadd.f32 %v1456, %v1426
    %v1458 = vadd.f32 %v1457, %v1427
    %v1459 = vrot.slane %v1458, 4
    %v1460 = vadd.f32 %v1458, %v1459
    %v1461 = vrot.slane %v1460, 2
    %v1462 = vadd.f32 %v1460, %v1461
    %v1463 = vrot.slane %v1462, 1
    %v1464 = vadd.f32 %v1462, %v1463
    %v1465 = vadd.f32 %v1428, %v1429
    %v1466 = vadd.f32 %v1465, %v1430
    %v1467 = vadd.f32 %v1466, %v1431
    %v1468 = vadd.f32 %v1467, %v1432
    %v1469 = vadd.f32 %v1468, %v1433
    %v1470 = vadd.f32 %v1469, %v1434
    %v1471 = vadd.f32 %v1470, %v1435
    %v1472 = vadd.f32 %v1471, %v1436
    %v1473 = vadd.f32 %v1472, %v1437
    %v1474 = vadd.f32 %v1473, %v1438
    %v1475 = vadd.f32 %v1474, %v1439
    %v1476 = vadd.f32 %v1475, %v1440
    %v1477 = vadd.f32 %v1476, %v1441
    %v1478 = vadd.f32 %v1477, %v1442
    %v1479 = vadd.f32 %v1478, %v1443
    %v1480 = vrot.slane %v1479, 4
    %v1481 = vadd.f32 %v1479, %v1480
    %v1482 = vrot.slane %v1481, 2
    %v1483 = vadd.f32 %v1481, %v1482
    %v1484 = vrot.slane %v1483, 1
    %v1485 = vadd.f32 %v1483, %v1484
    %v1486 = vmul.f32 %v1464, 0.03125
    %v1487 = vmul.f32 %v1485, 0.03125
    %v1488 = vmul.f32 %v1486, %v1486
    %v1489 = vsub.f32 %v1487, %v1488
    %v1490 = vmax.f32 %v1489, 0.0
    %v1491 = vadd.f32 %v1490, 1e-05
    %v1492 = vrsqrt.pop %v1491
    %v1493 = vsub.f32 %v1412, %v1486
    %v1494 = vsub.f32 %v1413, %v1486
    %v1495 = vsub.f32 %v1414, %v1486
    %v1496 = vsub.f32 %v1415, %v1486
    %v1497 = vsub.f32 %v1416, %v1486
    %v1498 = vsub.f32 %v1417, %v1486
    %v1499 = vsub.f32 %v1418, %v1486
    %v1500 = vsub.f32 %v1419, %v1486
    %v1501 = vsub.f32 %v1420, %v1486
    %v1502 = vsub.f32 %v1421, %v1486
    %v1503 = vsub.f32 %v1422, %v1486
    %v1504 = vsub.f32 %v1423, %v1486
    %v1505 = vsub.f32 %v1424, %v1486
    %v1506 = vsub.f32 %v1425, %v1486
    %v1507 = vsub.f32 %v1426, %v1486
    %v1508 = vsub.f32 %v1427, %v1486
    %v1509 = vmul.f32 %v1492, %v946
    %v1510 = vlaneseq
    %v1511 = vshrl.u32 %v1510, 7
    %v1512 = vsub.s32 0, %v1511
    %v1513 = vrot.slane %v1509, %v1512
    %v1514 = vmul.f32 %v1493, %v1513
    %v1515 = vmul.f32 %v1494, %v1513
    %v1516 = vmul.f32 %v1495, %v1513
    %v1517 = vmul.f32 %v1496, %v1513
    %v1518 = vmul.f32 %v1497, %v1513
    %v1519 = vmul.f32 %v1498, %v1513
    %v1520 = vmul.f32 %v1499, %v1513
    %v1521 = vmul.f32 %v1500, %v1513
    %v1522 = vmul.f32 %v1501, %v1513
    %v1523 = vmul.f32 %v1502, %v1513
    %v1524 = vmul.f32 %v1503, %v1513
    %v1525 = vmul.f32 %v1504, %v1513
    %v1526 = vmul.f32 %v1505, %v1513
    %v1527 = vmul.f32 %v1506, %v1513
    %v1528 = vmul.f32 %v1507, %v1513
    %v1529 = vmul.f32 %v1508, %v1513
    %v1530 = vlaneseq
    %v1531 = vshrl.u32 %v1530, 7
    %v1532 = vsub.s32 0, %v1531
    %v1533 = vrot.slane %v947, %v1532
    %v1534 = vadd.f32 %v1514, %v1533
    %v1535 = vadd.f32 %v1515, %v1533
    %v1536 = vadd.f32 %v1516, %v1533
    %v1537 = vadd.f32 %v1517, %v1533
    %v1538 = vadd.f32 %v1518, %v1533
    %v1539 = vadd.f32 %v1519, %v1533
    %v1540 = vadd.f32 %v1520, %v1533
    %v1541 = vadd.f32 %v1521, %v1533
    %v1542 = vadd.f32 %v1522, %v1533
    %v1543 = vadd.f32 %v1523, %v1533
    %v1544 = vadd.f32 %v1524, %v1533
    %v1545 = vadd.f32 %v1525, %v1533
    %v1546 = vadd.f32 %v1526, %v1533
    %v1547 = vadd.f32 %v1527, %v1533
    %v1548 = vadd.f32 %v1528, %v1533
    %v1549 = vadd.f32 %v1529, %v1533
    %v1550 = vpack.c.bf16 %v1535, %v1534
    %v1551 = vpack.c.bf16 %v1537, %v1536
    %v1552 = vpack.c.bf16 %v1539, %v1538
    %v1553 = vpack.c.bf16 %v1541, %v1540
    %v1554 = vpack.c.bf16 %v1543, %v1542
    %v1555 = vpack.c.bf16 %v1545, %v1544
    %v1556 = vpack.c.bf16 %v1547, %v1546
    %v1557 = vpack.c.bf16 %v1549, %v1548
    %v1558 = vld [vmem:[#allocation11 + $0x40] sm:$0xf]
    %v1559 = vld [vmem:[#allocation11 + $0x44] sm:$0xf]
    %v1560 = vld [vmem:[#allocation11 + $0x48] sm:$0xf]
    %v1561 = vld [vmem:[#allocation11 + $0x4c] sm:$0xf]
    %v1562 = vld [vmem:[#allocation11 + $0x50] sm:$0xf]
    %v1563 = vld [vmem:[#allocation11 + $0x54] sm:$0xf]
    %v1564 = vld [vmem:[#allocation11 + $0x58] sm:$0xf]
    %v1565 = vld [vmem:[#allocation11 + $0x5c] sm:$0xf]
    %v1566 = vld [vmem:[#allocation11 + $0x60] sm:$0xf]
    %v1567 = vld [vmem:[#allocation11 + $0x64] sm:$0xf]
    %v1568 = vld [vmem:[#allocation11 + $0x68] sm:$0xf]
    %v1569 = vld [vmem:[#allocation11 + $0x6c] sm:$0xf]
    %v1570 = vld [vmem:[#allocation11 + $0x70] sm:$0xf]
    %v1571 = vld [vmem:[#allocation11 + $0x74] sm:$0xf]
    %v1572 = vld [vmem:[#allocation11 + $0x78] sm:$0xf]
    %v1573 = vld [vmem:[#allocation11 + $0x7c] sm:$0xf]
    %v1590 = vunpack.c.l.b16 %v1558
    %v1591 = vunpack.c.l.b16 %v1559
    %v1592 = vunpack.c.l.b16 %v1560
    %v1593 = vunpack.c.l.b16 %v1561
    %v1594 = vunpack.c.l.b16 %v1562
    %v1595 = vunpack.c.l.b16 %v1563
    %v1596 = vunpack.c.l.b16 %v1564
    %v1597 = vunpack.c.l.b16 %v1565
    %v1598 = vunpack.c.l.b16 %v1566
    %v1599 = vunpack.c.l.b16 %v1567
    %v1600 = vunpack.c.l.b16 %v1568
    %v1601 = vunpack.c.l.b16 %v1569
    %v1602 = vunpack.c.l.b16 %v1570
    %v1603 = vunpack.c.l.b16 %v1571
    %v1604 = vunpack.c.l.b16 %v1572
    %v1605 = vunpack.c.l.b16 %v1573
    %v1606 = vpack.c.b16 %v1591, %v1590
    %v1607 = vpack.c.b16 %v1593, %v1592
    %v1608 = vpack.c.b16 %v1595, %v1594
    %v1609 = vpack.c.b16 %v1597, %v1596
    %v1610 = vpack.c.b16 %v1599, %v1598
    %v1611 = vpack.c.b16 %v1601, %v1600
    %v1612 = vpack.c.b16 %v1603, %v1602
    %v1613 = vpack.c.b16 %v1605, %v1604
    %1622 = vmatprep.subr.bf16.mxu0 0
    %1623 = vmatpush1.bf16.msra.mxu0 %v1613
    %1624 = vmatprep.subr.bf16.mxu0 0
    %1625 = vmatpush1.bf16.msra.mxu0 %v1612
    %1626 = vmatprep.subr.bf16.mxu0 0
    %1627 = vmatpush1.bf16.msra.mxu0 %v1611
    %1628 = vmatprep.subr.bf16.mxu0 0
    %1629 = vmatpush1.bf16.msra.mxu0 %v1610
    %1630 = vmatprep.subr.bf16.mxu0 0
    %1631 = vmatpush1.bf16.msra.mxu0 %v1609
    %1632 = vmatprep.subr.bf16.mxu0 0
    %1633 = vmatpush1.bf16.msra.mxu0 %v1608
    %1634 = vmatprep.subr.bf16.mxu0 0
    %1635 = vmatpush1.bf16.msra.mxu0 %v1607
    %1636 = vmatprep.subr.bf16.mxu0 0
    %1637 = vmatpush1.bf16.msra.mxu0 %v1606
    %1638 = vmatprep.subr.bf16.mxu0 0
    %1639 = vmatpush2.bf16.msra.mxu0 0
    %1640 = vmatprep.subr.bf16.mxu0 0
    %1641 = vmatpush2.bf16.msra.mxu0 0
    %1642 = vmatprep.subr.bf16.mxu0 0
    %1643 = vmatpush2.bf16.msra.mxu0 0
    %1644 = vmatprep.subr.bf16.mxu0 0
    %1645 = vmatpush2.bf16.msra.mxu0 0
    %1646 = vmatprep.subr.bf16.mxu0 0
    %1647 = vmatpush2.bf16.msra.mxu0 0
    %1648 = vmatprep.subr.bf16.mxu0 0
    %1649 = vmatpush2.bf16.msra.mxu0 0
    %1650 = vmatprep.subr.bf16.mxu0 0
    %1651 = vmatpush2.bf16.msra.mxu0 0
    %1652 = vmatprep.subr.bf16.mxu0 0
    %1653 = vmatpush2.bf16.msra.mxu0 0
    %1654 = vmatprep.mubr.bf16.mxu0 0
    %1655 = vmatmul.mubr.bf16.gmra.mxu0 %v1550
    %v1656 = vpop.f32.mrf.mxu0
    %v1657 = vadd.f32 0.0, %v1656
    %v1658 = vpop.f32.mrf.mxu0
    %v1659 = vpop.f32.mrf.mxu0
    %v1660 = vadd.f32 0.0, %v1659
    %v1661 = vpop.f32.mrf.mxu0
    %1662 = vmatprep.mubr.bf16.mxu0 0
    %1663 = vmatmul.mubr.bf16.gmra.mxu0 %v1551
    %v1664 = vpop.f32.mrf.mxu0
    %v1665 = vadd.f32 0.0, %v1664
    %v1666 = vpop.f32.mrf.mxu0
    %v1667 = vpop.f32.mrf.mxu0
    %v1668 = vadd.f32 0.0, %v1667
    %v1669 = vpop.f32.mrf.mxu0
    %1670 = vmatprep.mubr.bf16.mxu0 0
    %1671 = vmatmul.mubr.bf16.gmra.mxu0 %v1552
    %v1672 = vpop.f32.mrf.mxu0
    %v1673 = vadd.f32 0.0, %v1672
    %v1674 = vpop.f32.mrf.mxu0
    %v1675 = vpop.f32.mrf.mxu0
    %v1676 = vadd.f32 0.0, %v1675
    %v1677 = vpop.f32.mrf.mxu0
    %1678 = vmatprep.mubr.bf16.mxu0 0
    %1679 = vmatmul.mubr.bf16.gmra.mxu0 %v1553
    %v1680 = vpop.f32.mrf.mxu0
    %v1681 = vadd.f32 0.0, %v1680
    %v1682 = vpop.f32.mrf.mxu0
    %v1683 = vpop.f32.mrf.mxu0
    %v1684 = vadd.f32 0.0, %v1683
    %v1685 = vpop.f32.mrf.mxu0
    %1686 = vmatprep.mubr.bf16.mxu0 0
    %1687 = vmatmul.mubr.bf16.gmra.mxu0 %v1554
    %v1688 = vpop.f32.mrf.mxu0
    %v1689 = vadd.f32 0.0, %v1688
    %v1690 = vpop.f32.mrf.mxu0
    %v1691 = vpop.f32.mrf.mxu0
    %v1692 = vadd.f32 0.0, %v1691
    %v1693 = vpop.f32.mrf.mxu0
    %1694 = vmatprep.mubr.bf16.mxu0 0
    %1695 = vmatmul.mubr.bf16.gmra.mxu0 %v1555
    %v1696 = vpop.f32.mrf.mxu0
    %v1697 = vadd.f32 0.0, %v1696
    %v1698 = vpop.f32.mrf.mxu0
    %v1699 = vpop.f32.mrf.mxu0
    %v1700 = vadd.f32 0.0, %v1699
    %v1701 = vpop.f32.mrf.mxu0
    %1702 = vmatprep.mubr.bf16.mxu0 0
    %1703 = vmatmul.mubr.bf16.gmra.mxu0 %v1556
    %v1704 = vpop.f32.mrf.mxu0
    %v1705 = vadd.f32 0.0, %v1704
    %v1706 = vpop.f32.mrf.mxu0
    %v1707 = vpop.f32.mrf.mxu0
    %v1708 = vadd.f32 0.0, %v1707
    %v1709 = vpop.f32.mrf.mxu0
    %1710 = vmatprep.mubr.bf16.mxu0 0
    %1711 = vmatmul.mubr.bf16.gmra.mxu0 %v1557
    %v1712 = vpop.f32.mrf.mxu0
    %v1713 = vadd.f32 0.0, %v1712
    %v1714 = vpop.f32.mrf.mxu0
    %v1715 = vpop.f32.mrf.mxu0
    %v1716 = vadd.f32 0.0, %v1715
    %v1717 = vpop.f32.mrf.mxu0
    %1718 = vdwg.mxu0
    %v1735 = vunpack.c.l.b16 %v929
    %v1736 = vunpack.c.l.b16 %v930
    %v1737 = vunpack.c.l.b16 %v931
    %v1738 = vunpack.c.l.b16 %v932
    %v1739 = vunpack.c.l.b16 %v933
    %v1740 = vunpack.c.l.b16 %v934
    %v1741 = vunpack.c.l.b16 %v935
    %v1742 = vunpack.c.l.b16 %v936
    %v1743 = vunpack.c.l.b16 %v937
    %v1744 = vunpack.c.l.b16 %v938
    %v1745 = vunpack.c.l.b16 %v939
    %v1746 = vunpack.c.l.b16 %v940
    %v1747 = vunpack.c.l.b16 %v941
    %v1748 = vunpack.c.l.b16 %v942
    %v1749 = vunpack.c.l.b16 %v943
    %v1750 = vunpack.c.l.b16 %v944
    %v1751 = vpack.c.b16 %v1736, %v1735
    %v1752 = vpack.c.b16 %v1738, %v1737
    %v1753 = vpack.c.b16 %v1740, %v1739
    %v1754 = vpack.c.b16 %v1742, %v1741
    %v1755 = vpack.c.b16 %v1744, %v1743
    %v1756 = vpack.c.b16 %v1746, %v1745
    %v1757 = vpack.c.b16 %v1748, %v1747
    %v1758 = vpack.c.b16 %v1750, %v1749
    %1767 = vmatprep.subr.bf16.mxu0 0
    %1768 = vmatpush1.bf16.msra.mxu0 %v1758
    %1769 = vmatprep.subr.bf16.mxu0 0
    %1770 = vmatpush1.bf16.msra.mxu0 %v1757
    %1771 = vmatprep.subr.bf16.mxu0 0
    %1772 = vmatpush1.bf16.msra.mxu0 %v1756
    %1773 = vmatprep.subr.bf16.mxu0 0
    %1774 = vmatpush1.bf16.msra.mxu0 %v1755
    %1775 = vmatprep.subr.bf16.mxu0 0
    %1776 = vmatpush1.bf16.msra.mxu0 %v1754
    %1777 = vmatprep.subr.bf16.mxu0 0
    %1778 = vmatpush1.bf16.msra.mxu0 %v1753
    %1779 = vmatprep.subr.bf16.mxu0 0
    %1780 = vmatpush1.bf16.msra.mxu0 %v1752
    %1781 = vmatprep.subr.bf16.mxu0 0
    %1782 = vmatpush1.bf16.msra.mxu0 %v1751
    %1783 = vmatprep.subr.bf16.mxu0 0
    %1784 = vmatpush2.bf16.msra.mxu0 0
    %1785 = vmatprep.subr.bf16.mxu0 0
    %1786 = vmatpush2.bf16.msra.mxu0 0
    %1787 = vmatprep.subr.bf16.mxu0 0
    %1788 = vmatpush2.bf16.msra.mxu0 0
    %1789 = vmatprep.subr.bf16.mxu0 0
    %1790 = vmatpush2.bf16.msra.mxu0 0
    %1791 = vmatprep.subr.bf16.mxu0 0
    %1792 = vmatpush2.bf16.msra.mxu0 0
    %1793 = vmatprep.subr.bf16.mxu0 0
    %1794 = vmatpush2.bf16.msra.mxu0 0
    %1795 = vmatprep.subr.bf16.mxu0 0
    %1796 = vmatpush2.bf16.msra.mxu0 0
    %1797 = vmatprep.subr.bf16.mxu0 0
    %1798 = vmatpush2.bf16.msra.mxu0 0
    %1799 = vmatprep.mubr.bf16.mxu0 0
    %1800 = vmatmul.mubr.bf16.gmra.mxu0 %v921
    %v1801 = vpop.f32.mrf.mxu0
    %v1802 = vadd.f32 %v1657, %v1801
    %v1803 = vpop.f32.mrf.mxu0
    %v1804 = vpop.f32.mrf.mxu0
    %v1805 = vadd.f32 %v1660, %v1804
    %v1806 = vpop.f32.mrf.mxu0
    %1807 = vmatprep.mubr.bf16.mxu0 0
    %1808 = vmatmul.mubr.bf16.gmra.mxu0 %v922
    %v1809 = vpop.f32.mrf.mxu0
    %v1810 = vadd.f32 %v1665, %v1809
    %v1811 = vpop.f32.mrf.mxu0
    %v1812 = vpop.f32.mrf.mxu0
    %v1813 = vadd.f32 %v1668, %v1812
    %v1814 = vpop.f32.mrf.mxu0
    %1815 = vmatprep.mubr.bf16.mxu0 0
    %1816 = vmatmul.mubr.bf16.gmra.mxu0 %v923
    %v1817 = vpop.f32.mrf.mxu0
    %v1818 = vadd.f32 %v1673, %v1817
    %v1819 = vpop.f32.mrf.mxu0
    %v1820 = vpop.f32.mrf.mxu0
    %v1821 = vadd.f32 %v1676, %v1820
    %v1822 = vpop.f32.mrf.mxu0
    %1823 = vmatprep.mubr.bf16.mxu0 0
    %1824 = vmatmul.mubr.bf16.gmra.mxu0 %v924
    %v1825 = vpop.f32.mrf.mxu0
    %v1826 = vadd.f32 %v1681, %v1825
    %v1827 = vpop.f32.mrf.mxu0
    %v1828 = vpop.f32.mrf.mxu0
    %v1829 = vadd.f32 %v1684, %v1828
    %v1830 = vpop.f32.mrf.mxu0
    %1831 = vmatprep.mubr.bf16.mxu0 0
    %1832 = vmatmul.mubr.bf16.gmra.mxu0 %v925
    %v1833 = vpop.f32.mrf.mxu0
    %v1834 = vadd.f32 %v1689, %v1833
    %v1835 = vpop.f32.mrf.mxu0
    %v1836 = vpop.f32.mrf.mxu0
    %v1837 = vadd.f32 %v1692, %v1836
    %v1838 = vpop.f32.mrf.mxu0
    %1839 = vmatprep.mubr.bf16.mxu0 0
    %1840 = vmatmul.mubr.bf16.gmra.mxu0 %v926
    %v1841 = vpop.f32.mrf.mxu0
    %v1842 = vadd.f32 %v1697, %v1841
    %v1843 = vpop.f32.mrf.mxu0
    %v1844 = vpop.f32.mrf.mxu0
    %v1845 = vadd.f32 %v1700, %v1844
    %v1846 = vpop.f32.mrf.mxu0
    %1847 = vmatprep.mubr.bf16.mxu0 0
    %1848 = vmatmul.mubr.bf16.gmra.mxu0 %v927
    %v1849 = vpop.f32.mrf.mxu0
    %v1850 = vadd.f32 %v1705, %v1849
    %v1851 = vpop.f32.mrf.mxu0
    %v1852 = vpop.f32.mrf.mxu0
    %v1853 = vadd.f32 %v1708, %v1852
    %v1854 = vpop.f32.mrf.mxu0
    %1855 = vmatprep.mubr.bf16.mxu0 0
    %1856 = vmatmul.mubr.bf16.gmra.mxu0 %v928
    %v1857 = vpop.f32.mrf.mxu0
    %v1858 = vadd.f32 %v1713, %v1857
    %v1859 = vpop.f32.mrf.mxu0
    %v1860 = vpop.f32.mrf.mxu0
    %v1861 = vadd.f32 %v1716, %v1860
    %v1862 = vpop.f32.mrf.mxu0
    %1863 = vdwg.mxu0
    %v1864 = vld [vmem:[#allocation13 + $0x6] sm:$0x1]
    %v1865 = vld [vmem:[#allocation13 + $0x7] sm:$0x1]
    %v1866 = vld [vmem:[#allocation13 + $0x8] sm:$0x1]
    %1867 = vmatprep.subr.bf16.mxu0 0
    %1868 = vmatpush1.bf16.msra.mxu0 %v1557
    %1869 = vmatprep.subr.bf16.mxu0 0
    %1870 = vmatpush1.bf16.msra.mxu0 %v1556
    %1871 = vmatprep.subr.bf16.mxu0 0
    %1872 = vmatpush1.bf16.msra.mxu0 %v1555
    %1873 = vmatprep.subr.bf16.mxu0 0
    %1874 = vmatpush1.bf16.msra.mxu0 %v1554
    %1875 = vmatprep.subr.bf16.mxu0 0
    %1876 = vmatpush1.bf16.msra.mxu0 %v1553
    %1877 = vmatprep.subr.bf16.mxu0 0
    %1878 = vmatpush1.bf16.msra.mxu0 %v1552
    %1879 = vmatprep.subr.bf16.mxu0 0
    %1880 = vmatpush1.bf16.msra.mxu0 %v1551
    %1881 = vmatprep.subr.bf16.mxu0 0
    %1882 = vmatpush1.bf16.msra.mxu0 %v1550
    %1883 = vmatprep.subr.bf16.mxu0 0
    %1884 = vmatpush2.bf16.msra.mxu0 0
    %1885 = vmatprep.subr.bf16.mxu0 0
    %1886 = vmatpush2.bf16.msra.mxu0 0
    %1887 = vmatprep.subr.bf16.mxu0 0
    %1888 = vmatpush2.bf16.msra.mxu0 0
    %1889 = vmatprep.subr.bf16.mxu0 0
    %1890 = vmatpush2.bf16.msra.mxu0 0
    %1891 = vmatprep.subr.bf16.mxu0 0
    %1892 = vmatpush2.bf16.msra.mxu0 0
    %1893 = vmatprep.subr.bf16.mxu0 0
    %1894 = vmatpush2.bf16.msra.mxu0 0
    %1895 = vmatprep.subr.bf16.mxu0 0
    %1896 = vmatpush2.bf16.msra.mxu0 0
    %1897 = vmatprep.subr.bf16.mxu0 0
    %1898 = vmatpush2.bf16.msra.mxu0 0
    %1899 = vmatprep.mubr.bf16.mxu0 0
    %1900 = vmatmul.mubr.bf16.gmra.mxu0 %v252
    %v1901 = vpop.f32.mrf.mxu0
    %v1902 = vadd.f32 0.0, %v1901
    %v1903 = vpop.f32.mrf.mxu0
    %v1904 = vpop.f32.mrf.mxu0
    %v1905 = vadd.f32 0.0, %v1904
    %v1906 = vpop.f32.mrf.mxu0
    %1907 = vmatprep.mubr.bf16.mxu0 0
    %1908 = vmatmul.mubr.bf16.gmra.mxu0 %v253
    %v1909 = vpop.f32.mrf.mxu0
    %v1910 = vadd.f32 0.0, %v1909
    %v1911 = vpop.f32.mrf.mxu0
    %v1912 = vpop.f32.mrf.mxu0
    %v1913 = vadd.f32 0.0, %v1912
    %v1914 = vpop.f32.mrf.mxu0
    %1915 = vmatprep.mubr.bf16.mxu0 0
    %1916 = vmatmul.mubr.bf16.gmra.mxu0 %v254
    %v1917 = vpop.f32.mrf.mxu0
    %v1918 = vadd.f32 0.0, %v1917
    %v1919 = vpop.f32.mrf.mxu0
    %v1920 = vpop.f32.mrf.mxu0
    %v1921 = vadd.f32 0.0, %v1920
    %v1922 = vpop.f32.mrf.mxu0
    %1923 = vmatprep.mubr.bf16.mxu0 0
    %1924 = vmatmul.mubr.bf16.gmra.mxu0 %v255
    %v1925 = vpop.f32.mrf.mxu0
    %v1926 = vadd.f32 0.0, %v1925
    %v1927 = vpop.f32.mrf.mxu0
    %v1928 = vpop.f32.mrf.mxu0
    %v1929 = vadd.f32 0.0, %v1928
    %v1930 = vpop.f32.mrf.mxu0
    %1931 = vmatprep.mubr.bf16.mxu0 0
    %1932 = vmatmul.mubr.bf16.gmra.mxu0 %v256
    %v1933 = vpop.f32.mrf.mxu0
    %v1934 = vadd.f32 0.0, %v1933
    %v1935 = vpop.f32.mrf.mxu0
    %v1936 = vpop.f32.mrf.mxu0
    %v1937 = vadd.f32 0.0, %v1936
    %v1938 = vpop.f32.mrf.mxu0
    %1939 = vmatprep.mubr.bf16.mxu0 0
    %1940 = vmatmul.mubr.bf16.gmra.mxu0 %v257
    %v1941 = vpop.f32.mrf.mxu0
    %v1942 = vadd.f32 0.0, %v1941
    %v1943 = vpop.f32.mrf.mxu0
    %v1944 = vpop.f32.mrf.mxu0
    %v1945 = vadd.f32 0.0, %v1944
    %v1946 = vpop.f32.mrf.mxu0
    %1947 = vmatprep.mubr.bf16.mxu0 0
    %1948 = vmatmul.mubr.bf16.gmra.mxu0 %v258
    %v1949 = vpop.f32.mrf.mxu0
    %v1950 = vadd.f32 0.0, %v1949
    %v1951 = vpop.f32.mrf.mxu0
    %v1952 = vpop.f32.mrf.mxu0
    %v1953 = vadd.f32 0.0, %v1952
    %v1954 = vpop.f32.mrf.mxu0
    %1955 = vmatprep.mubr.bf16.mxu0 0
    %1956 = vmatmul.mubr.bf16.gmra.mxu0 %v259
    %v1957 = vpop.f32.mrf.mxu0
    %v1958 = vadd.f32 0.0, %v1957
    %v1959 = vpop.f32.mrf.mxu0
    %v1960 = vpop.f32.mrf.mxu0
    %v1961 = vadd.f32 0.0, %v1960
    %v1962 = vpop.f32.mrf.mxu0
    %1963 = vdwg.mxu0
    %v1964 = vpack.c.bf16 %v1905, %v1902
    %v1965 = vpack.c.bf16 %v1913, %v1910
    %v1966 = vpack.c.bf16 %v1921, %v1918
    %v1967 = vpack.c.bf16 %v1929, %v1926
    %v1968 = vpack.c.bf16 %v1937, %v1934
    %v1969 = vpack.c.bf16 %v1945, %v1942
    %v1970 = vpack.c.bf16 %v1953, %v1950
    %v1971 = vpack.c.bf16 %v1961, %v1958
    %v1972 = vld [vmem:[#allocation10] sm:$0xf]
    %v1973 = vld [vmem:[#allocation10 + $0x4] sm:$0xf]
    %v1974 = vld [vmem:[#allocation10 + $0x8] sm:$0xf]
    %v1975 = vld [vmem:[#allocation10 + $0xc] sm:$0xf]
    %v1976 = vld [vmem:[#allocation10 + $0x10] sm:$0xf]
    %v1977 = vld [vmem:[#allocation10 + $0x14] sm:$0xf]
    %v1978 = vld [vmem:[#allocation10 + $0x18] sm:$0xf]
    %v1979 = vld [vmem:[#allocation10 + $0x1c] sm:$0xf]
    %v1980 = vld [vmem:[#allocation10 + $0x20] sm:$0xf]
    %v1981 = vld [vmem:[#allocation10 + $0x24] sm:$0xf]
    %v1982 = vld [vmem:[#allocation10 + $0x28] sm:$0xf]
    %v1983 = vld [vmem:[#allocation10 + $0x2c] sm:$0xf]
    %v1984 = vld [vmem:[#allocation10 + $0x30] sm:$0xf]
    %v1985 = vld [vmem:[#allocation10 + $0x34] sm:$0xf]
    %v1986 = vld [vmem:[#allocation10 + $0x38] sm:$0xf]
    %v1987 = vld [vmem:[#allocation10 + $0x3c] sm:$0xf]
    %s1988 = scalar_lea.vmem [#allocation10], 64
    %v1989 = vld [vmem:[%s1988] sm:$0xf]
    %v1990 = vld [vmem:[%s1988 + $0x4] sm:$0xf]
    %v1991 = vld [vmem:[%s1988 + $0x8] sm:$0xf]
    %v1992 = vld [vmem:[%s1988 + $0xc] sm:$0xf]
    %v1993 = vld [vmem:[%s1988 + $0x10] sm:$0xf]
    %v1994 = vld [vmem:[%s1988 + $0x14] sm:$0xf]
    %v1995 = vld [vmem:[%s1988 + $0x18] sm:$0xf]
    %v1996 = vld [vmem:[%s1988 + $0x1c] sm:$0xf]
    %v1997 = vld [vmem:[%s1988 + $0x20] sm:$0xf]
    %v1998 = vld [vmem:[%s1988 + $0x24] sm:$0xf]
    %v1999 = vld [vmem:[%s1988 + $0x28] sm:$0xf]
    %v2000 = vld [vmem:[%s1988 + $0x2c] sm:$0xf]
    %v2001 = vld [vmem:[%s1988 + $0x30] sm:$0xf]
    %v2002 = vld [vmem:[%s1988 + $0x34] sm:$0xf]
    %v2003 = vld [vmem:[%s1988 + $0x38] sm:$0xf]
    %v2004 = vld [vmem:[%s1988 + $0x3c] sm:$0xf]
    %v2021 = vunpack.c.l.b16 %v1989
    %v2022 = vunpack.c.l.b16 %v1990
    %v2023 = vunpack.c.l.b16 %v1991
    %v2024 = vunpack.c.l.b16 %v1992
    %v2025 = vunpack.c.l.b16 %v1993
    %v2026 = vunpack.c.l.b16 %v1994
    %v2027 = vunpack.c.l.b16 %v1995
    %v2028 = vunpack.c.l.b16 %v1996
    %v2029 = vunpack.c.l.b16 %v1997
    %v2030 = vunpack.c.l.b16 %v1998
    %v2031 = vunpack.c.l.b16 %v1999
    %v2032 = vunpack.c.l.b16 %v2000
    %v2033 = vunpack.c.l.b16 %v2001
    %v2034 = vunpack.c.l.b16 %v2002
    %v2035 = vunpack.c.l.b16 %v2003
    %v2036 = vunpack.c.l.b16 %v2004
    %v2037 = vpack.c.b16 %v2022, %v2021
    %v2038 = vpack.c.b16 %v2024, %v2023
    %v2039 = vpack.c.b16 %v2026, %v2025
    %v2040 = vpack.c.b16 %v2028, %v2027
    %v2041 = vpack.c.b16 %v2030, %v2029
    %v2042 = vpack.c.b16 %v2032, %v2031
    %v2043 = vpack.c.b16 %v2034, %v2033
    %v2044 = vpack.c.b16 %v2036, %v2035
    %2053 = vmatprep.subr.bf16.mxu0 0
    %2054 = vmatpush1.bf16.msra.mxu0 %v2044
    %2055 = vmatprep.subr.bf16.mxu0 0
    %2056 = vmatpush1.bf16.msra.mxu0 %v2043
    %2057 = vmatprep.subr.bf16.mxu0 0
    %2058 = vmatpush1.bf16.msra.mxu0 %v2042
    %2059 = vmatprep.subr.bf16.mxu0 0
    %2060 = vmatpush1.bf16.msra.mxu0 %v2041
    %2061 = vmatprep.subr.bf16.mxu0 0
    %2062 = vmatpush1.bf16.msra.mxu0 %v2040
    %2063 = vmatprep.subr.bf16.mxu0 0
    %2064 = vmatpush1.bf16.msra.mxu0 %v2039
    %2065 = vmatprep.subr.bf16.mxu0 0
    %2066 = vmatpush1.bf16.msra.mxu0 %v2038
    %2067 = vmatprep.subr.bf16.mxu0 0
    %2068 = vmatpush1.bf16.msra.mxu0 %v2037
    %2069 = vmatprep.subr.bf16.mxu0 0
    %2070 = vmatpush2.bf16.msra.mxu0 0
    %2071 = vmatprep.subr.bf16.mxu0 0
    %2072 = vmatpush2.bf16.msra.mxu0 0
    %2073 = vmatprep.subr.bf16.mxu0 0
    %2074 = vmatpush2.bf16.msra.mxu0 0
    %2075 = vmatprep.subr.bf16.mxu0 0
    %2076 = vmatpush2.bf16.msra.mxu0 0
    %2077 = vmatprep.subr.bf16.mxu0 0
    %2078 = vmatpush2.bf16.msra.mxu0 0
    %2079 = vmatprep.subr.bf16.mxu0 0
    %2080 = vmatpush2.bf16.msra.mxu0 0
    %2081 = vmatprep.subr.bf16.mxu0 0
    %2082 = vmatpush2.bf16.msra.mxu0 0
    %2083 = vmatprep.subr.bf16.mxu0 0
    %2084 = vmatpush2.bf16.msra.mxu0 0
    %2085 = vmatprep.mubr.bf16.mxu0 0
    %2086 = vmatmul.mubr.bf16.gmra.mxu0 %v1550
    %v2087 = vpop.f32.mrf.mxu0
    %v2088 = vadd.f32 0.0, %v2087
    %v2089 = vpop.f32.mrf.mxu0
    %v2090 = vpop.f32.mrf.mxu0
    %v2091 = vadd.f32 0.0, %v2090
    %v2092 = vpop.f32.mrf.mxu0
    %2093 = vmatprep.mubr.bf16.mxu0 0
    %2094 = vmatmul.mubr.bf16.gmra.mxu0 %v1551
    %v2095 = vpop.f32.mrf.mxu0
    %v2096 = vadd.f32 0.0, %v2095
    %v2097 = vpop.f32.mrf.mxu0
    %v2098 = vpop.f32.mrf.mxu0
    %v2099 = vadd.f32 0.0, %v2098
    %v2100 = vpop.f32.mrf.mxu0
    %2101 = vmatprep.mubr.bf16.mxu0 0
    %2102 = vmatmul.mubr.bf16.gmra.mxu0 %v1552
    %v2103 = vpop.f32.mrf.mxu0
    %v2104 = vadd.f32 0.0, %v2103
    %v2105 = vpop.f32.mrf.mxu0
    %v2106 = vpop.f32.mrf.mxu0
    %v2107 = vadd.f32 0.0, %v2106
    %v2108 = vpop.f32.mrf.mxu0
    %2109 = vmatprep.mubr.bf16.mxu0 0
    %2110 = vmatmul.mubr.bf16.gmra.mxu0 %v1553
    %v2111 = vpop.f32.mrf.mxu0
    %v2112 = vadd.f32 0.0, %v2111
    %v2113 = vpop.f32.mrf.mxu0
    %v2114 = vpop.f32.mrf.mxu0
    %v2115 = vadd.f32 0.0, %v2114
    %v2116 = vpop.f32.mrf.mxu0
    %2117 = vmatprep.mubr.bf16.mxu0 0
    %2118 = vmatmul.mubr.bf16.gmra.mxu0 %v1554
    %v2119 = vpop.f32.mrf.mxu0
    %v2120 = vadd.f32 0.0, %v2119
    %v2121 = vpop.f32.mrf.mxu0
    %v2122 = vpop.f32.mrf.mxu0
    %v2123 = vadd.f32 0.0, %v2122
    %v2124 = vpop.f32.mrf.mxu0
    %2125 = vmatprep.mubr.bf16.mxu0 0
    %2126 = vmatmul.mubr.bf16.gmra.mxu0 %v1555
    %v2127 = vpop.f32.mrf.mxu0
    %v2128 = vadd.f32 0.0, %v2127
    %v2129 = vpop.f32.mrf.mxu0
    %v2130 = vpop.f32.mrf.mxu0
    %v2131 = vadd.f32 0.0, %v2130
    %v2132 = vpop.f32.mrf.mxu0
    %2133 = vmatprep.mubr.bf16.mxu0 0
    %2134 = vmatmul.mubr.bf16.gmra.mxu0 %v1556
    %v2135 = vpop.f32.mrf.mxu0
    %v2136 = vadd.f32 0.0, %v2135
    %v2137 = vpop.f32.mrf.mxu0
    %v2138 = vpop.f32.mrf.mxu0
    %v2139 = vadd.f32 0.0, %v2138
    %v2140 = vpop.f32.mrf.mxu0
    %2141 = vmatprep.mubr.bf16.mxu0 0
    %2142 = vmatmul.mubr.bf16.gmra.mxu0 %v1557
    %v2143 = vpop.f32.mrf.mxu0
    %v2144 = vadd.f32 0.0, %v2143
    %v2145 = vpop.f32.mrf.mxu0
    %v2146 = vpop.f32.mrf.mxu0
    %v2147 = vadd.f32 0.0, %v2146
    %v2148 = vpop.f32.mrf.mxu0
    %2149 = vdwg.mxu0
    %v2166 = vunpack.c.l.b16 %v1972
    %v2167 = vunpack.c.l.b16 %v1973
    %v2168 = vunpack.c.l.b16 %v1974
    %v2169 = vunpack.c.l.b16 %v1975
    %v2170 = vunpack.c.l.b16 %v1976
    %v2171 = vunpack.c.l.b16 %v1977
    %v2172 = vunpack.c.l.b16 %v1978
    %v2173 = vunpack.c.l.b16 %v1979
    %v2174 = vunpack.c.l.b16 %v1980
    %v2175 = vunpack.c.l.b16 %v1981
    %v2176 = vunpack.c.l.b16 %v1982
    %v2177 = vunpack.c.l.b16 %v1983
    %v2178 = vunpack.c.l.b16 %v1984
    %v2179 = vunpack.c.l.b16 %v1985
    %v2180 = vunpack.c.l.b16 %v1986
    %v2181 = vunpack.c.l.b16 %v1987
    %v2182 = vpack.c.b16 %v2167, %v2166
    %v2183 = vpack.c.b16 %v2169, %v2168
    %v2184 = vpack.c.b16 %v2171, %v2170
    %v2185 = vpack.c.b16 %v2173, %v2172
    %v2186 = vpack.c.b16 %v2175, %v2174
    %v2187 = vpack.c.b16 %v2177, %v2176
    %v2188 = vpack.c.b16 %v2179, %v2178
    %v2189 = vpack.c.b16 %v2181, %v2180
    %2198 = vmatprep.subr.bf16.mxu0 0
    %2199 = vmatpush1.bf16.msra.mxu0 %v2189
    %2200 = vmatprep.subr.bf16.mxu0 0
    %2201 = vmatpush1.bf16.msra.mxu0 %v2188
    %2202 = vmatprep.subr.bf16.mxu0 0
    %2203 = vmatpush1.bf16.msra.mxu0 %v2187
    %2204 = vmatprep.subr.bf16.mxu0 0
    %2205 = vmatpush1.bf16.msra.mxu0 %v2186
    %2206 = vmatprep.subr.bf16.mxu0 0
    %2207 = vmatpush1.bf16.msra.mxu0 %v2185
    %2208 = vmatprep.subr.bf16.mxu0 0
    %2209 = vmatpush1.bf16.msra.mxu0 %v2184
    %2210 = vmatprep.subr.bf16.mxu0 0
    %2211 = vmatpush1.bf16.msra.mxu0 %v2183
    %2212 = vmatprep.subr.bf16.mxu0 0
    %2213 = vmatpush1.bf16.msra.mxu0 %v2182
    %2214 = vmatprep.subr.bf16.mxu0 0
    %2215 = vmatpush2.bf16.msra.mxu0 0
    %2216 = vmatprep.subr.bf16.mxu0 0
    %2217 = vmatpush2.bf16.msra.mxu0 0
    %2218 = vmatprep.subr.bf16.mxu0 0
    %2219 = vmatpush2.bf16.msra.mxu0 0
    %2220 = vmatprep.subr.bf16.mxu0 0
    %2221 = vmatpush2.bf16.msra.mxu0 0
    %2222 = vmatprep.subr.bf16.mxu0 0
    %2223 = vmatpush2.bf16.msra.mxu0 0
    %2224 = vmatprep.subr.bf16.mxu0 0
    %2225 = vmatpush2.bf16.msra.mxu0 0
    %2226 = vmatprep.subr.bf16.mxu0 0
    %2227 = vmatpush2.bf16.msra.mxu0 0
    %2228 = vmatprep.subr.bf16.mxu0 0
    %2229 = vmatpush2.bf16.msra.mxu0 0
    %2230 = vmatprep.mubr.bf16.mxu0 0
    %2231 = vmatmul.mubr.bf16.gmra.mxu0 %v1964
    %v2232 = vpop.f32.mrf.mxu0
    %v2233 = vadd.f32 %v2088, %v2232
    %v2234 = vpop.f32.mrf.mxu0
    %v2235 = vpop.f32.mrf.mxu0
    %v2236 = vadd.f32 %v2091, %v2235
    %v2237 = vpop.f32.mrf.mxu0
    %2238 = vmatprep.mubr.bf16.mxu0 0
    %2239 = vmatmul.mubr.bf16.gmra.mxu0 %v1965
    %v2240 = vpop.f32.mrf.mxu0
    %v2241 = vadd.f32 %v2096, %v2240
    %v2242 = vpop.f32.mrf.mxu0
    %v2243 = vpop.f32.mrf.mxu0
    %v2244 = vadd.f32 %v2099, %v2243
    %v2245 = vpop.f32.mrf.mxu0
    %2246 = vmatprep.mubr.bf16.mxu0 0
    %2247 = vmatmul.mubr.bf16.gmra.mxu0 %v1966
    %v2248 = vpop.f32.mrf.mxu0
    %v2249 = vadd.f32 %v2104, %v2248
    %v2250 = vpop.f32.mrf.mxu0
    %v2251 = vpop.f32.mrf.mxu0
    %v2252 = vadd.f32 %v2107, %v2251
    %v2253 = vpop.f32.mrf.mxu0
    %2254 = vmatprep.mubr.bf16.mxu0 0
    %2255 = vmatmul.mubr.bf16.gmra.mxu0 %v1967
    %v2256 = vpop.f32.mrf.mxu0
    %v2257 = vadd.f32 %v2112, %v2256
    %v2258 = vpop.f32.mrf.mxu0
    %v2259 = vpop.f32.mrf.mxu0
    %v2260 = vadd.f32 %v2115, %v2259
    %v2261 = vpop.f32.mrf.mxu0
    %2262 = vmatprep.mubr.bf16.mxu0 0
    %2263 = vmatmul.mubr.bf16.gmra.mxu0 %v1968
    %v2264 = vpop.f32.mrf.mxu0
    %v2265 = vadd.f32 %v2120, %v2264
    %v2266 = vpop.f32.mrf.mxu0
    %v2267 = vpop.f32.mrf.mxu0
    %v2268 = vadd.f32 %v2123, %v2267
    %v2269 = vpop.f32.mrf.mxu0
    %2270 = vmatprep.mubr.bf16.mxu0 0
    %2271 = vmatmul.mubr.bf16.gmra.mxu0 %v1969
    %v2272 = vpop.f32.mrf.mxu0
    %v2273 = vadd.f32 %v2128, %v2272
    %v2274 = vpop.f32.mrf.mxu0
    %v2275 = vpop.f32.mrf.mxu0
    %v2276 = vadd.f32 %v2131, %v2275
    %v2277 = vpop.f32.mrf.mxu0
    %2278 = vmatprep.mubr.bf16.mxu0 0
    %2279 = vmatmul.mubr.bf16.gmra.mxu0 %v1970
    %v2280 = vpop.f32.mrf.mxu0
    %v2281 = vadd.f32 %v2136, %v2280
    %v2282 = vpop.f32.mrf.mxu0
    %v2283 = vpop.f32.mrf.mxu0
    %v2284 = vadd.f32 %v2139, %v2283
    %v2285 = vpop.f32.mrf.mxu0
    %2286 = vmatprep.mubr.bf16.mxu0 0
    %2287 = vmatmul.mubr.bf16.gmra.mxu0 %v1971
    %v2288 = vpop.f32.mrf.mxu0
    %v2289 = vadd.f32 %v2144, %v2288
    %v2290 = vpop.f32.mrf.mxu0
    %v2291 = vpop.f32.mrf.mxu0
    %v2292 = vadd.f32 %v2147, %v2291
    %v2293 = vpop.f32.mrf.mxu0
    %2294 = vdwg.mxu0
    %v2295 = vlaneseq
    %v2296 = vshrl.u32 %v2295, 7
    %v2297 = vsub.s32 0, %v2296
    %v2298 = vrot.slane %v1864, %v2297
    %v2299 = vadd.f32 %v2233, %v2298
    %v2300 = vadd.f32 %v2236, %v2298
    %v2301 = vadd.f32 %v2241, %v2298
    %v2302 = vadd.f32 %v2244, %v2298
    %v2303 = vadd.f32 %v2249, %v2298
    %v2304 = vadd.f32 %v2252, %v2298
    %v2305 = vadd.f32 %v2257, %v2298
    %v2306 = vadd.f32 %v2260, %v2298
    %v2307 = vadd.f32 %v2265, %v2298
    %v2308 = vadd.f32 %v2268, %v2298
    %v2309 = vadd.f32 %v2273, %v2298
    %v2310 = vadd.f32 %v2276, %v2298
    %v2311 = vadd.f32 %v2281, %v2298
    %v2312 = vadd.f32 %v2284, %v2298
    %v2313 = vadd.f32 %v2289, %v2298
    %v2314 = vadd.f32 %v2292, %v2298
    %v2315 = vmax.f32 %v2299, 0.0
    %v2316 = vmax.f32 %v2300, 0.0
    %v2317 = vmax.f32 %v2301, 0.0
    %v2318 = vmax.f32 %v2302, 0.0
    %v2319 = vmax.f32 %v2303, 0.0
    %v2320 = vmax.f32 %v2304, 0.0
    %v2321 = vmax.f32 %v2305, 0.0
    %v2322 = vmax.f32 %v2306, 0.0
    %v2323 = vmax.f32 %v2307, 0.0
    %v2324 = vmax.f32 %v2308, 0.0
    %v2325 = vmax.f32 %v2309, 0.0
    %v2326 = vmax.f32 %v2310, 0.0
    %v2327 = vmax.f32 %v2311, 0.0
    %v2328 = vmax.f32 %v2312, 0.0
    %v2329 = vmax.f32 %v2313, 0.0
    %v2330 = vmax.f32 %v2314, 0.0
    %v2331 = vsel %vm767, %v2315, 0.0
    %v2332 = vsel %vm768, %v2316, 0.0
    %v2333 = vsel %vm769, %v2317, 0.0
    %v2334 = vsel %vm770, %v2318, 0.0
    %v2335 = vsel %vm771, %v2319, 0.0
    %v2336 = vsel %vm772, %v2320, 0.0
    %v2337 = vsel %vm773, %v2321, 0.0
    %v2338 = vsel %vm774, %v2322, 0.0
    %v2339 = vsel %vm775, %v2323, 0.0
    %v2340 = vsel %vm776, %v2324, 0.0
    %v2341 = vsel %vm777, %v2325, 0.0
    %v2342 = vsel %vm778, %v2326, 0.0
    %v2343 = vsel %vm779, %v2327, 0.0
    %v2344 = vsel %vm780, %v2328, 0.0
    %v2345 = vsel %vm781, %v2329, 0.0
    %v2346 = vsel %vm782, %v2330, 0.0
    %v2347 = vmul.f32 %v2331, %v2331
    %v2348 = vmul.f32 %v2332, %v2332
    %v2349 = vmul.f32 %v2333, %v2333
    %v2350 = vmul.f32 %v2334, %v2334
    %v2351 = vmul.f32 %v2335, %v2335
    %v2352 = vmul.f32 %v2336, %v2336
    %v2353 = vmul.f32 %v2337, %v2337
    %v2354 = vmul.f32 %v2338, %v2338
    %v2355 = vmul.f32 %v2339, %v2339
    %v2356 = vmul.f32 %v2340, %v2340
    %v2357 = vmul.f32 %v2341, %v2341
    %v2358 = vmul.f32 %v2342, %v2342
    %v2359 = vmul.f32 %v2343, %v2343
    %v2360 = vmul.f32 %v2344, %v2344
    %v2361 = vmul.f32 %v2345, %v2345
    %v2362 = vmul.f32 %v2346, %v2346
    %v2363 = vadd.f32 %v2331, %v2332
    %v2364 = vadd.f32 %v2363, %v2333
    %v2365 = vadd.f32 %v2364, %v2334
    %v2366 = vadd.f32 %v2365, %v2335
    %v2367 = vadd.f32 %v2366, %v2336
    %v2368 = vadd.f32 %v2367, %v2337
    %v2369 = vadd.f32 %v2368, %v2338
    %v2370 = vadd.f32 %v2369, %v2339
    %v2371 = vadd.f32 %v2370, %v2340
    %v2372 = vadd.f32 %v2371, %v2341
    %v2373 = vadd.f32 %v2372, %v2342
    %v2374 = vadd.f32 %v2373, %v2343
    %v2375 = vadd.f32 %v2374, %v2344
    %v2376 = vadd.f32 %v2375, %v2345
    %v2377 = vadd.f32 %v2376, %v2346
    %v2378 = vrot.slane %v2377, 4
    %v2379 = vadd.f32 %v2377, %v2378
    %v2380 = vrot.slane %v2379, 2
    %v2381 = vadd.f32 %v2379, %v2380
    %v2382 = vrot.slane %v2381, 1
    %v2383 = vadd.f32 %v2381, %v2382
    %v2384 = vadd.f32 %v2347, %v2348
    %v2385 = vadd.f32 %v2384, %v2349
    %v2386 = vadd.f32 %v2385, %v2350
    %v2387 = vadd.f32 %v2386, %v2351
    %v2388 = vadd.f32 %v2387, %v2352
    %v2389 = vadd.f32 %v2388, %v2353
    %v2390 = vadd.f32 %v2389, %v2354
    %v2391 = vadd.f32 %v2390, %v2355
    %v2392 = vadd.f32 %v2391, %v2356
    %v2393 = vadd.f32 %v2392, %v2357
    %v2394 = vadd.f32 %v2393, %v2358
    %v2395 = vadd.f32 %v2394, %v2359
    %v2396 = vadd.f32 %v2395, %v2360
    %v2397 = vadd.f32 %v2396, %v2361
    %v2398 = vadd.f32 %v2397, %v2362
    %v2399 = vrot.slane %v2398, 4
    %v2400 = vadd.f32 %v2398, %v2399
    %v2401 = vrot.slane %v2400, 2
    %v2402 = vadd.f32 %v2400, %v2401
    %v2403 = vrot.slane %v2402, 1
    %v2404 = vadd.f32 %v2402, %v2403
    %v2405 = vmul.f32 %v2383, 0.03125
    %v2406 = vmul.f32 %v2404, 0.03125
    %v2407 = vmul.f32 %v2405, %v2405
    %v2408 = vsub.f32 %v2406, %v2407
    %v2409 = vmax.f32 %v2408, 0.0
    %v2410 = vadd.f32 %v2409, 1e-05
    %v2411 = vrsqrt.pop %v2410
    %v2412 = vsub.f32 %v2331, %v2405
    %v2413 = vsub.f32 %v2332, %v2405
    %v2414 = vsub.f32 %v2333, %v2405
    %v2415 = vsub.f32 %v2334, %v2405
    %v2416 = vsub.f32 %v2335, %v2405
    %v2417 = vsub.f32 %v2336, %v2405
    %v2418 = vsub.f32 %v2337, %v2405
    %v2419 = vsub.f32 %v2338, %v2405
    %v2420 = vsub.f32 %v2339, %v2405
    %v2421 = vsub.f32 %v2340, %v2405
    %v2422 = vsub.f32 %v2341, %v2405
    %v2423 = vsub.f32 %v2342, %v2405
    %v2424 = vsub.f32 %v2343, %v2405
    %v2425 = vsub.f32 %v2344, %v2405
    %v2426 = vsub.f32 %v2345, %v2405
    %v2427 = vsub.f32 %v2346, %v2405
    %v2428 = vmul.f32 %v2411, %v1865
    %v2429 = vlaneseq
    %v2430 = vshrl.u32 %v2429, 7
    %v2431 = vsub.s32 0, %v2430
    %v2432 = vrot.slane %v2428, %v2431
    %v2433 = vmul.f32 %v2412, %v2432
    %v2434 = vmul.f32 %v2413, %v2432
    %v2435 = vmul.f32 %v2414, %v2432
    %v2436 = vmul.f32 %v2415, %v2432
    %v2437 = vmul.f32 %v2416, %v2432
    %v2438 = vmul.f32 %v2417, %v2432
    %v2439 = vmul.f32 %v2418, %v2432
    %v2440 = vmul.f32 %v2419, %v2432
    %v2441 = vmul.f32 %v2420, %v2432
    %v2442 = vmul.f32 %v2421, %v2432
    %v2443 = vmul.f32 %v2422, %v2432
    %v2444 = vmul.f32 %v2423, %v2432
    %v2445 = vmul.f32 %v2424, %v2432
    %v2446 = vmul.f32 %v2425, %v2432
    %v2447 = vmul.f32 %v2426, %v2432
    %v2448 = vmul.f32 %v2427, %v2432
    %v2449 = vlaneseq
    %v2450 = vshrl.u32 %v2449, 7
    %v2451 = vsub.s32 0, %v2450
    %v2452 = vrot.slane %v1866, %v2451
    %v2453 = vadd.f32 %v2433, %v2452
    %v2454 = vadd.f32 %v2434, %v2452
    %v2455 = vadd.f32 %v2435, %v2452
    %v2456 = vadd.f32 %v2436, %v2452
    %v2457 = vadd.f32 %v2437, %v2452
    %v2458 = vadd.f32 %v2438, %v2452
    %v2459 = vadd.f32 %v2439, %v2452
    %v2460 = vadd.f32 %v2440, %v2452
    %v2461 = vadd.f32 %v2441, %v2452
    %v2462 = vadd.f32 %v2442, %v2452
    %v2463 = vadd.f32 %v2443, %v2452
    %v2464 = vadd.f32 %v2444, %v2452
    %v2465 = vadd.f32 %v2445, %v2452
    %v2466 = vadd.f32 %v2446, %v2452
    %v2467 = vadd.f32 %v2447, %v2452
    %v2468 = vadd.f32 %v2448, %v2452
    %v2469 = vpack.c.bf16 %v2454, %v2453
    %v2470 = vpack.c.bf16 %v2456, %v2455
    %v2471 = vpack.c.bf16 %v2458, %v2457
    %v2472 = vpack.c.bf16 %v2460, %v2459
    %v2473 = vpack.c.bf16 %v2462, %v2461
    %v2474 = vpack.c.bf16 %v2464, %v2463
    %v2475 = vpack.c.bf16 %v2466, %v2465
    %v2476 = vpack.c.bf16 %v2468, %v2467
    %v2477 = vld [vmem:[#allocation11 + $0x80] sm:$0xf]
    %v2478 = vld [vmem:[#allocation11 + $0x84] sm:$0xf]
    %v2479 = vld [vmem:[#allocation11 + $0x88] sm:$0xf]
    %v2480 = vld [vmem:[#allocation11 + $0x8c] sm:$0xf]
    %v2481 = vld [vmem:[#allocation11 + $0x90] sm:$0xf]
    %v2482 = vld [vmem:[#allocation11 + $0x94] sm:$0xf]
    %v2483 = vld [vmem:[#allocation11 + $0x98] sm:$0xf]
    %v2484 = vld [vmem:[#allocation11 + $0x9c] sm:$0xf]
    %v2485 = vld [vmem:[#allocation11 + $0xa0] sm:$0xf]
    %v2486 = vld [vmem:[#allocation11 + $0xa4] sm:$0xf]
    %v2487 = vld [vmem:[#allocation11 + $0xa8] sm:$0xf]
    %v2488 = vld [vmem:[#allocation11 + $0xac] sm:$0xf]
    %v2489 = vld [vmem:[#allocation11 + $0xb0] sm:$0xf]
    %v2490 = vld [vmem:[#allocation11 + $0xb4] sm:$0xf]
    %v2491 = vld [vmem:[#allocation11 + $0xb8] sm:$0xf]
    %v2492 = vld [vmem:[#allocation11 + $0xbc] sm:$0xf]
    %v2509 = vunpack.c.l.b16 %v2477
    %v2510 = vunpack.c.l.b16 %v2478
    %v2511 = vunpack.c.l.b16 %v2479
    %v2512 = vunpack.c.l.b16 %v2480
    %v2513 = vunpack.c.l.b16 %v2481
    %v2514 = vunpack.c.l.b16 %v2482
    %v2515 = vunpack.c.l.b16 %v2483
    %v2516 = vunpack.c.l.b16 %v2484
    %v2517 = vunpack.c.l.b16 %v2485
    %v2518 = vunpack.c.l.b16 %v2486
    %v2519 = vunpack.c.l.b16 %v2487
    %v2520 = vunpack.c.l.b16 %v2488
    %v2521 = vunpack.c.l.b16 %v2489
    %v2522 = vunpack.c.l.b16 %v2490
    %v2523 = vunpack.c.l.b16 %v2491
    %v2524 = vunpack.c.l.b16 %v2492
    %v2525 = vpack.c.b16 %v2510, %v2509
    %v2526 = vpack.c.b16 %v2512, %v2511
    %v2527 = vpack.c.b16 %v2514, %v2513
    %v2528 = vpack.c.b16 %v2516, %v2515
    %v2529 = vpack.c.b16 %v2518, %v2517
    %v2530 = vpack.c.b16 %v2520, %v2519
    %v2531 = vpack.c.b16 %v2522, %v2521
    %v2532 = vpack.c.b16 %v2524, %v2523
    %2541 = vmatprep.subr.bf16.mxu0 0
    %2542 = vmatpush1.bf16.msra.mxu0 %v2532
    %2543 = vmatprep.subr.bf16.mxu0 0
    %2544 = vmatpush1.bf16.msra.mxu0 %v2531
    %2545 = vmatprep.subr.bf16.mxu0 0
    %2546 = vmatpush1.bf16.msra.mxu0 %v2530
    %2547 = vmatprep.subr.bf16.mxu0 0
    %2548 = vmatpush1.bf16.msra.mxu0 %v2529
    %2549 = vmatprep.subr.bf16.mxu0 0
    %2550 = vmatpush1.bf16.msra.mxu0 %v2528
    %2551 = vmatprep.subr.bf16.mxu0 0
    %2552 = vmatpush1.bf16.msra.mxu0 %v2527
    %2553 = vmatprep.subr.bf16.mxu0 0
    %2554 = vmatpush1.bf16.msra.mxu0 %v2526
    %2555 = vmatprep.subr.bf16.mxu0 0
    %2556 = vmatpush1.bf16.msra.mxu0 %v2525
    %2557 = vmatprep.subr.bf16.mxu0 0
    %2558 = vmatpush2.bf16.msra.mxu0 0
    %2559 = vmatprep.subr.bf16.mxu0 0
    %2560 = vmatpush2.bf16.msra.mxu0 0
    %2561 = vmatprep.subr.bf16.mxu0 0
    %2562 = vmatpush2.bf16.msra.mxu0 0
    %2563 = vmatprep.subr.bf16.mxu0 0
    %2564 = vmatpush2.bf16.msra.mxu0 0
    %2565 = vmatprep.subr.bf16.mxu0 0
    %2566 = vmatpush2.bf16.msra.mxu0 0
    %2567 = vmatprep.subr.bf16.mxu0 0
    %2568 = vmatpush2.bf16.msra.mxu0 0
    %2569 = vmatprep.subr.bf16.mxu0 0
    %2570 = vmatpush2.bf16.msra.mxu0 0
    %2571 = vmatprep.subr.bf16.mxu0 0
    %2572 = vmatpush2.bf16.msra.mxu0 0
    %2573 = vmatprep.mubr.bf16.mxu0 0
    %2574 = vmatmul.mubr.bf16.gmra.mxu0 %v2469
    %v2575 = vpop.f32.mrf.mxu0
    %v2576 = vadd.f32 0.0, %v2575
    %v2577 = vpop.f32.mrf.mxu0
    %v2578 = vpop.f32.mrf.mxu0
    %v2579 = vadd.f32 0.0, %v2578
    %v2580 = vpop.f32.mrf.mxu0
    %2581 = vmatprep.mubr.bf16.mxu0 0
    %2582 = vmatmul.mubr.bf16.gmra.mxu0 %v2470
    %v2583 = vpop.f32.mrf.mxu0
    %v2584 = vadd.f32 0.0, %v2583
    %v2585 = vpop.f32.mrf.mxu0
    %v2586 = vpop.f32.mrf.mxu0
    %v2587 = vadd.f32 0.0, %v2586
    %v2588 = vpop.f32.mrf.mxu0
    %2589 = vmatprep.mubr.bf16.mxu0 0
    %2590 = vmatmul.mubr.bf16.gmra.mxu0 %v2471
    %v2591 = vpop.f32.mrf.mxu0
    %v2592 = vadd.f32 0.0, %v2591
    %v2593 = vpop.f32.mrf.mxu0
    %v2594 = vpop.f32.mrf.mxu0
    %v2595 = vadd.f32 0.0, %v2594
    %v2596 = vpop.f32.mrf.mxu0
    %2597 = vmatprep.mubr.bf16.mxu0 0
    %2598 = vmatmul.mubr.bf16.gmra.mxu0 %v2472
    %v2599 = vpop.f32.mrf.mxu0
    %v2600 = vadd.f32 0.0, %v2599
    %v2601 = vpop.f32.mrf.mxu0
    %v2602 = vpop.f32.mrf.mxu0
    %v2603 = vadd.f32 0.0, %v2602
    %v2604 = vpop.f32.mrf.mxu0
    %2605 = vmatprep.mubr.bf16.mxu0 0
    %2606 = vmatmul.mubr.bf16.gmra.mxu0 %v2473
    %v2607 = vpop.f32.mrf.mxu0
    %v2608 = vadd.f32 0.0, %v2607
    %v2609 = vpop.f32.mrf.mxu0
    %v2610 = vpop.f32.mrf.mxu0
    %v2611 = vadd.f32 0.0, %v2610
    %v2612 = vpop.f32.mrf.mxu0
    %2613 = vmatprep.mubr.bf16.mxu0 0
    %2614 = vmatmul.mubr.bf16.gmra.mxu0 %v2474
    %v2615 = vpop.f32.mrf.mxu0
    %v2616 = vadd.f32 0.0, %v2615
    %v2617 = vpop.f32.mrf.mxu0
    %v2618 = vpop.f32.mrf.mxu0
    %v2619 = vadd.f32 0.0, %v2618
    %v2620 = vpop.f32.mrf.mxu0
    %2621 = vmatprep.mubr.bf16.mxu0 0
    %2622 = vmatmul.mubr.bf16.gmra.mxu0 %v2475
    %v2623 = vpop.f32.mrf.mxu0
    %v2624 = vadd.f32 0.0, %v2623
    %v2625 = vpop.f32.mrf.mxu0
    %v2626 = vpop.f32.mrf.mxu0
    %v2627 = vadd.f32 0.0, %v2626
    %v2628 = vpop.f32.mrf.mxu0
    %2629 = vmatprep.mubr.bf16.mxu0 0
    %2630 = vmatmul.mubr.bf16.gmra.mxu0 %v2476
    %v2631 = vpop.f32.mrf.mxu0
    %v2632 = vadd.f32 0.0, %v2631
    %v2633 = vpop.f32.mrf.mxu0
    %v2634 = vpop.f32.mrf.mxu0
    %v2635 = vadd.f32 0.0, %v2634
    %v2636 = vpop.f32.mrf.mxu0
    %2637 = vdwg.mxu0
    %v2638 = vadd.f32 %v1802, %v2576
    %v2639 = vadd.f32 %v1805, %v2579
    %v2640 = vadd.f32 %v1810, %v2584
    %v2641 = vadd.f32 %v1813, %v2587
    %v2642 = vadd.f32 %v1818, %v2592
    %v2643 = vadd.f32 %v1821, %v2595
    %v2644 = vadd.f32 %v1826, %v2600
    %v2645 = vadd.f32 %v1829, %v2603
    %v2646 = vadd.f32 %v1834, %v2608
    %v2647 = vadd.f32 %v1837, %v2611
    %v2648 = vadd.f32 %v1842, %v2616
    %v2649 = vadd.f32 %v1845, %v2619
    %v2650 = vadd.f32 %v1850, %v2624
    %v2651 = vadd.f32 %v1853, %v2627
    %v2652 = vadd.f32 %v1858, %v2632
    %v2653 = vadd.f32 %v1861, %v2635
    %v2654 = vld [vmem:[#allocation13 + $0x9] sm:$0x1]
    %v2655 = vlaneseq
    %v2656 = vshrl.u32 %v2655, 7
    %v2657 = vsub.s32 0, %v2656
    %v2658 = vrot.slane %v2654, %v2657
    %v2659 = vadd.f32 %v2638, %v2658
    %v2660 = vadd.f32 %v2639, %v2658
    %v2661 = vadd.f32 %v2640, %v2658
    %v2662 = vadd.f32 %v2641, %v2658
    %v2663 = vadd.f32 %v2642, %v2658
    %v2664 = vadd.f32 %v2643, %v2658
    %v2665 = vadd.f32 %v2644, %v2658
    %v2666 = vadd.f32 %v2645, %v2658
    %v2667 = vadd.f32 %v2646, %v2658
    %v2668 = vadd.f32 %v2647, %v2658
    %v2669 = vadd.f32 %v2648, %v2658
    %v2670 = vadd.f32 %v2649, %v2658
    %v2671 = vadd.f32 %v2650, %v2658
    %v2672 = vadd.f32 %v2651, %v2658
    %v2673 = vadd.f32 %v2652, %v2658
    %v2674 = vadd.f32 %v2653, %v2658
    %v2675 = vmax.f32 %v2659, 0.0
    %v2676 = vmax.f32 %v2660, 0.0
    %v2677 = vmax.f32 %v2661, 0.0
    %v2678 = vmax.f32 %v2662, 0.0
    %v2679 = vmax.f32 %v2663, 0.0
    %v2680 = vmax.f32 %v2664, 0.0
    %v2681 = vmax.f32 %v2665, 0.0
    %v2682 = vmax.f32 %v2666, 0.0
    %v2683 = vmax.f32 %v2667, 0.0
    %v2684 = vmax.f32 %v2668, 0.0
    %v2685 = vmax.f32 %v2669, 0.0
    %v2686 = vmax.f32 %v2670, 0.0
    %v2687 = vmax.f32 %v2671, 0.0
    %v2688 = vmax.f32 %v2672, 0.0
    %v2689 = vmax.f32 %v2673, 0.0
    %v2690 = vmax.f32 %v2674, 0.0
    %2691 = vst [vmem:[#allocation14] sm:$0xff] %v2675
    %2692 = vst [vmem:[#allocation14 + $0x8] sm:$0xff] %v2676
    %2693 = vst [vmem:[#allocation14 + $0x10] sm:$0xff] %v2677
    %2694 = vst [vmem:[#allocation14 + $0x18] sm:$0xff] %v2678
    %2695 = vst [vmem:[#allocation14 + $0x20] sm:$0xff] %v2679
    %2696 = vst [vmem:[#allocation14 + $0x28] sm:$0xff] %v2680
    %2697 = vst [vmem:[#allocation14 + $0x30] sm:$0xff] %v2681
    %2698 = vst [vmem:[#allocation14 + $0x38] sm:$0xff] %v2682
    %2699 = vst [vmem:[#allocation14 + $0x40] sm:$0xff] %v2683
    %2700 = vst [vmem:[#allocation14 + $0x48] sm:$0xff] %v2684
    %2701 = vst [vmem:[#allocation14 + $0x50] sm:$0xff] %v2685
    %2702 = vst [vmem:[#allocation14 + $0x58] sm:$0xff] %v2686
    %2703 = vst [vmem:[#allocation14 + $0x60] sm:$0xff] %v2687
    %2704 = vst [vmem:[#allocation14 + $0x68] sm:$0xff] %v2688
    %2705 = vst [vmem:[#allocation14 + $0x70] sm:$0xff] %v2689
    %2706 = vst [vmem:[#allocation14 + $0x78] sm:$0xff] %v2690
    // Predicated region
    $region58: #{tpu_custom_call.1} parent=1 // pred_check
      _
    $region59: #{tpu_custom_call.1} parent=1 // pred_check_branch
      %2708 = sbr.rel (0) target = $region61
    $region60: #{tpu_custom_call.1} parent=1 // pred_region
      %s2710 = ssub.s32 2048, 2048
      %2711 = vsyncadd [#allocation4], %s2710
      %s2712 = sshll.u32 [#allocation14], 4
      %s2713 = int_to_ptr.vmem [resolvable:$true] %s2712
      %2718 = dma.vmem_to_hbm [thread:$0]  %s2713, 2048, %s7, [#allocation4], 128, 128, 8
    $region61: #{tpu_custom_call.1} parent=1 // pred_fallthru
      _
    // Predicated region
    $region62: #{tpu_custom_call.1} parent=1 // pred_check
      _
    $region63: #{tpu_custom_call.1} parent=1 // pred_check_branch
      %2720 = sbr.rel (0) target = $region65
    $region64: #{tpu_custom_call.1} parent=1 // pred_region
      %2721 = dma.done [#allocation4], 2048
    $region65: #{tpu_custom_call.1} parent=1 // pred_fallthru
      _
    %2722 = vsyncpa [#allocation3], 1
    %2723 = vsyncpa [#allocation6], 1
    %2724 = vsyncpa [#allocation9], 1
    %2725 = vsyncpa [#allocation12], 1
    %2726 = vsyncpa [#allocation4], 1

</llo_original>
